<compile_context>
chip_gen: v7x
topology: tpu7x:2x2x1
jax: 0.10.0
libtpu: 0.0.40
codegen_flags: <defaults>
</compile_context>

<pallas_src>
import functools

import jax
import jax.numpy as jnp
from jax.experimental import pallas as pl
from jax.experimental.pallas import tpu as pltpu

LEAKY_SLOPE = 0.01        # torch.nn.LeakyReLU default negative_slope
LOG_STD_MIN = -20.0
LOG_STD_MAX = 2.0


def _leaky_relu(x):
    return jnp.where(x > 0, x, LEAKY_SLOPE * x)


def _round_up(x, m):
    return (x + m - 1) // m * m


def actor_kernel(x_ref, w_ref, b_ref, out_ref, *, E, H, A, E8, H8):
    """One batch-tile of the fused Actor forward pass.

    x_ref:   (TB, E)            batch tile of encodings
    w_ref:   (E8 + 2*H8, C)     packed [W1; W2; Wmu|Wls], rows 8-aligned
    b_ref:   (24, C)            packed biases at row offsets 0 / 8 / 16
    out_ref: (TB, 2A)           fused [mu | log_std] slab
    """
    dot = functools.partial(jnp.dot, preferred_element_type=jnp.float32,
                            precision=jax.lax.Precision.HIGHEST)
    A2 = 2 * A

    x = x_ref[...]                                   # (TB, E)

    # Static (free) slices of the packed operands; all row offsets are 8-aligned.
    w1 = w_ref[0:E, 0:H]                             # (E, H)
    w2 = w_ref[E8:E8 + H, 0:H]                       # (H, H)
    wh = w_ref[E8 + H8:E8 + H8 + H, 0:A2]            # (H, 2A)  = [Wmu | Wls]
    b1 = b_ref[0:1, 0:H]                             # (1, H)
    b2 = b_ref[8:9, 0:H]                             # (1, H)
    bh = b_ref[16:17, 0:A2]                          # (1, 2A)  = [bmu | bls]

    h = _leaky_relu(dot(x, w1) + b1)                 # (TB, H)
    h = _leaky_relu(dot(h, w2) + b2)                 # (TB, H)

    head = dot(h, wh) + bh                           # (TB, 2A) = [mu | log_std]
    clamped = jnp.clip(head, LOG_STD_MIN, LOG_STD_MAX)
    col = jax.lax.broadcasted_iota(jnp.int32, head.shape, 1)
    # mu columns (col < A) stay unclamped; log_std columns get the clamp.
    out_ref[...] = jnp.where(col < A, head, clamped).astype(out_ref.dtype)


def pack_actor_params(params):
    """Pack the 8 Linear params into 2 operands (call once, outside the step)."""
    w1, b1 = params["w1"], params["b1"]
    w2, b2 = params["w2"], params["b2"]
    E, H = w1.shape
    A = params["wmu"].shape[1]
    A2 = 2 * A
    E8, H8 = _round_up(E, 8), _round_up(H, 8)
    C = max(H, A2)

    w_head = jnp.concatenate([params["wmu"], params["wls"]], axis=1)   # (H, 2A)
    b_head = jnp.concatenate([params["bmu"], params["bls"]], axis=1)   # (1, 2A)

    def pad2(a, rows, cols):
        return jnp.pad(a, ((0, rows - a.shape[0]), (0, cols - a.shape[1])))

    w_pack = jnp.concatenate(
        [pad2(w1, E8, C), pad2(w2, H8, C), pad2(w_head, H8, C)], axis=0
    ).astype(jnp.float32)                                              # (E8+2*H8, C)
    b_pack = jnp.concatenate(
        [pad2(b1, 8, C), pad2(b2, 8, C), pad2(b_head, 8, C)], axis=0
    ).astype(jnp.float32)                                              # (24, C)

    meta = dict(E=E, H=H, A=A, E8=E8, H8=H8, C=C)
    return w_pack, b_pack, meta


def actor_forward(encode, packed, *, block_batch=512):
    """Actor forward: encode (B, E) -> (mu, log_std), each (B, A)."""
    w_pack, b_pack, meta = packed
    E, H, A = meta["E"], meta["H"], meta["A"]
    E8, H8, C = meta["E8"], meta["H8"], meta["C"]
    A2 = 2 * A
    B = encode.shape[0]

    # Batch tiling: tiny batches run as one full-array block; big batches are
    # tiled (TB multiple of 8) and padded to a multiple of TB.
    if B <= block_batch:
        TB, B_pad = B, B
    else:
        TB = _round_up(block_batch, 8)
        B_pad = _round_up(B, TB)

    x = encode.astype(jnp.float32)
    if B_pad != B:
        x = jnp.pad(x, ((0, B_pad - B), (0, 0)))

    grid = (B_pad // TB,)
    kernel = functools.partial(actor_kernel, E=E, H=H, A=A, E8=E8, H8=H8)

    flops = 2 * B_pad * (E * H + H * H + H * A2)
    bytes_accessed = 4 * (B_pad * E + w_pack.size + b_pack.size + B_pad * A2)

    out = pl.pallas_call(
        kernel,
        out_shape=jax.ShapeDtypeStruct((B_pad, A2), jnp.float32),
        grid=grid,
        in_specs=[
            pl.BlockSpec((TB, E), lambda i: (i, 0)),             # batch-tiled input
            pl.BlockSpec((E8 + 2 * H8, C), lambda i: (0, 0)),    # resident weights
            pl.BlockSpec((24, C), lambda i: (0, 0)),             # resident biases
        ],
        out_specs=pl.BlockSpec((TB, A2), lambda i: (i, 0)),
        compiler_params=pltpu.CompilerParams(
            dimension_semantics=("parallel",)),                  # v7x: 2 TCs split batch
        cost_estimate=pl.CostEstimate(
            flops=flops, transcendentals=0, bytes_accessed=bytes_accessed),
    )(x, w_pack, b_pack)

    mu = out[:B, :A]
    log_std = out[:B, A:]
    return mu, log_std


def init_actor_params(key, encode_size, action_size, hidden_size=32):
    """nn.Linear-style init: U(-1/sqrt(fan_in), +1/sqrt(fan_in)).

    Weights stored as (in_features, out_features); biases as (1, out_features).
    """
    def linear(k, fan_in, fan_out):
        kw, kb = jax.random.split(k)
        bound = 1.0 / jnp.sqrt(jnp.float32(fan_in))
        w = jax.random.uniform(kw, (fan_in, fan_out), jnp.float32, -bound, bound)
        b = jax.random.uniform(kb, (1, fan_out), jnp.float32, -bound, bound)
        return w, b

    k1, k2, k3, k4 = jax.random.split(key, 4)
    w1, b1 = linear(k1, encode_size, hidden_size)
    w2, b2 = linear(k2, hidden_size, hidden_size)
    wmu, bmu = linear(k3, hidden_size, action_size)
    wls, bls = linear(k4, hidden_size, action_size)
    return dict(w1=w1, b1=b1, w2=w2, b2=b2,
                wmu=wmu, bmu=bmu, wls=wls, bls=bls)


def actor_forward_ref(encode, p):
    """Pure-JAX reference for correctness checking."""
    h = encode @ p["w1"] + p["b1"]
    h = jnp.where(h > 0, h, LEAKY_SLOPE * h)
    h = h @ p["w2"] + p["b2"]
    h = jnp.where(h > 0, h, LEAKY_SLOPE * h)
    mu = h @ p["wmu"] + p["bmu"]
    log_std = jnp.clip(h @ p["wls"] + p["bls"], LOG_STD_MIN, LOG_STD_MAX)
    return mu, log_std


if __name__ == "__main__":
    key = jax.random.PRNGKey(0)
    k_params, k_x, k_x2 = jax.random.split(key, 3)

    encode_size, action_size, hidden_size = 16, 4, 32
    params = init_actor_params(k_params, encode_size, action_size, hidden_size)
    packed = pack_actor_params(params)

    # Small shape matching the module spec (single grid step, full-array blocks).
    batch = 2
    encode = jax.random.normal(k_x, (batch, encode_size), jnp.float32)
    mu, log_std = actor_forward(encode, packed)
    jax.block_until_ready((mu, log_std))

    mu_ref, ls_ref = actor_forward_ref(encode, params)
    assert mu.shape == (batch, action_size)
    assert log_std.shape == (batch, action_size)
    assert jnp.allclose(mu, mu_ref, atol=1e-5, rtol=1e-5)
    assert jnp.allclose(log_std, ls_ref, atol=1e-5, rtol=1e-5)

    # Larger, non-multiple batch exercising the batch grid + padding path.
    batch2 = 200
    encode2 = jax.random.normal(k_x2, (batch2, encode_size), jnp.float32)
    mu2, ls2 = actor_forward(encode2, packed, block_batch=128)
    jax.block_until_ready((mu2, ls2))
    mu2_ref, ls2_ref = actor_forward_ref(encode2, params)
    assert jnp.allclose(mu2, mu2_ref, atol=1e-5, rtol=1e-5)
    assert jnp.allclose(ls2, ls2_ref, atol=1e-5, rtol=1e-5)

    # TODO(synk): evaluate()/get_action() sampling (Normal + tanh squash) is host
    # logic outside forward(); it is intentionally not part of this kernel.
    print("KERNEL_OK")
</pallas_src>

<mosaic_0001>
module attributes {stable_mosaic.version = 11 : i64} {
  func.func @actor_kernel(%arg0: i32, %arg1: memref<2x16xf32, #tpu.memory_space<vmem>>, %arg2: memref<80x32xf32, #tpu.memory_space<vmem>>, %arg3: memref<24x32xf32, #tpu.memory_space<vmem>>, %arg4: memref<2x8xf32, #tpu.memory_space<vmem>>) attributes {dimension_semantics = [#tpu.dimension_semantics<parallel>], iteration_bounds = array<i64: 1>, scalar_prefetch = 0 : i64, scratch_operands = 0 : i64, tpu.core_type = #tpu.core_type<tc>, window_params = [{transform_indices = @transform_0, window_bounds = array<i64: 2, 16>}, {pipeline_mode = #tpu.pipeline_mode<synchronous>, transform_indices = @transform_1, window_bounds = array<i64: 80, 32>}, {pipeline_mode = #tpu.pipeline_mode<synchronous>, transform_indices = @transform_2, window_bounds = array<i64: 24, 32>}, {transform_indices = @transform_3, window_bounds = array<i64: 2, 8>}]} {
    %c0 = arith.constant 0 : index
    %c0_0 = arith.constant 0 : index
    %0 = vector.load %arg1[%c0, %c0_0] : memref<2x16xf32, #tpu.memory_space<vmem>>, vector<2x16xf32>
    %c0_1 = arith.constant 0 : index
    %c0_2 = arith.constant 0 : index
    %1 = vector.load %arg2[%c0_1, %c0_2] : memref<80x32xf32, #tpu.memory_space<vmem>>, vector<16x32xf32>
    %c16 = arith.constant 16 : index
    %c0_3 = arith.constant 0 : index
    %2 = vector.load %arg2[%c16, %c0_3] : memref<80x32xf32, #tpu.memory_space<vmem>>, vector<32x32xf32>
    %c48 = arith.constant 48 : index
    %c0_4 = arith.constant 0 : index
    %3 = vector.load %arg2[%c48, %c0_4] : memref<80x32xf32, #tpu.memory_space<vmem>>, vector<32x8xf32>
    %c0_5 = arith.constant 0 : index
    %c0_6 = arith.constant 0 : index
    %4 = vector.load %arg3[%c0_5, %c0_6] : memref<24x32xf32, #tpu.memory_space<vmem>>, vector<1x32xf32>
    %c8 = arith.constant 8 : index
    %c0_7 = arith.constant 0 : index
    %5 = vector.load %arg3[%c8, %c0_7] : memref<24x32xf32, #tpu.memory_space<vmem>>, vector<1x32xf32>
    %c16_8 = arith.constant 16 : index
    %c0_9 = arith.constant 0 : index
    %6 = vector.load %arg3[%c16_8, %c0_9] : memref<24x32xf32, #tpu.memory_space<vmem>>, vector<1x8xf32>
    %cst = arith.constant dense<0.000000e+00> : vector<2x32xf32>
    %7 = tpu.matmul %0, %1, %cst {dimension_numbers = #tpu.dot_dimension_numbers<[1], [0], [0], [1], [0, 0, 1, 1], [], []>, precision = #tpu.contract_precision<fp32>} : vector<2x16xf32>, vector<16x32xf32>, vector<2x32xf32> -> vector<2x32xf32>
    %8 = vector.broadcast %4 : vector<1x32xf32> to vector<2x32xf32>
    %9 = arith.addf %7, %8 : vector<2x32xf32>
    %cst_10 = arith.constant 0.000000e+00 : f32
    %10 = vector.broadcast %cst_10 : f32 to vector<2x32xf32>
    %11 = arith.cmpf ogt, %9, %10 : vector<2x32xf32>
    %cst_11 = arith.constant 0.00999999977 : f32
    %12 = vector.broadcast %cst_11 : f32 to vector<2x32xf32>
    %13 = arith.mulf %12, %9 : vector<2x32xf32>
    %14 = arith.select %11, %9, %13 : vector<2x32xi1>, vector<2x32xf32>
    %cst_12 = arith.constant dense<0.000000e+00> : vector<2x32xf32>
    %15 = tpu.matmul %14, %2, %cst_12 {dimension_numbers = #tpu.dot_dimension_numbers<[1], [0], [0], [1], [0, 0, 1, 1], [], []>, precision = #tpu.contract_precision<fp32>} : vector<2x32xf32>, vector<32x32xf32>, vector<2x32xf32> -> vector<2x32xf32>
    %16 = vector.broadcast %5 : vector<1x32xf32> to vector<2x32xf32>
    %17 = arith.addf %15, %16 : vector<2x32xf32>
    %cst_13 = arith.constant 0.000000e+00 : f32
    %18 = vector.broadcast %cst_13 : f32 to vector<2x32xf32>
    %19 = arith.cmpf ogt, %17, %18 : vector<2x32xf32>
    %cst_14 = arith.constant 0.00999999977 : f32
    %20 = vector.broadcast %cst_14 : f32 to vector<2x32xf32>
    %21 = arith.mulf %20, %17 : vector<2x32xf32>
    %22 = arith.select %19, %17, %21 : vector<2x32xi1>, vector<2x32xf32>
    %cst_15 = arith.constant dense<0.000000e+00> : vector<2x8xf32>
    %23 = tpu.matmul %22, %3, %cst_15 {dimension_numbers = #tpu.dot_dimension_numbers<[1], [0], [0], [1], [0, 0, 1, 1], [], []>, precision = #tpu.contract_precision<fp32>} : vector<2x32xf32>, vector<32x8xf32>, vector<2x8xf32> -> vector<2x8xf32>
    %24 = vector.broadcast %6 : vector<1x8xf32> to vector<2x8xf32>
    %25 = arith.addf %23, %24 : vector<2x8xf32>
    %cst_16 = arith.constant -2.000000e+01 : f32
    %cst_17 = arith.constant 2.000000e+00 : f32
    %26 = vector.broadcast %cst_16 : f32 to vector<2x8xf32>
    %27 = arith.maximumf %26, %25 : vector<2x8xf32>
    %28 = vector.broadcast %cst_17 : f32 to vector<2x8xf32>
    %29 = arith.minimumf %28, %27 : vector<2x8xf32>
    %30 = tpu.iota {dimensions = array<i32: 1>} : vector<2x8xi32>
    %c4_i32 = arith.constant 4 : i32
    %31 = vector.broadcast %c4_i32 : i32 to vector<2x8xi32>
    %32 = arith.cmpi slt, %30, %31 : vector<2x8xi32>
    %33 = arith.select %32, %25, %29 : vector<2x8xi1>, vector<2x8xf32>
    %c0_18 = arith.constant 0 : index
    %c0_19 = arith.constant 0 : index
    %34 = vector.load %arg4[%c0_18, %c0_19] : memref<2x8xf32, #tpu.memory_space<vmem>>, vector<2x8xf32>
    tpu.vector_store %arg4[%c0_18, %c0_19], %33 {strides = array<i32>} : memref<2x8xf32, #tpu.memory_space<vmem>>, vector<2x8xf32>,
    return
  }
  func.func @transform_0(%arg0: i32) -> (i32, i32) {
    %c0_i32 = arith.constant 0 : i32
    %c0_i32_0 = arith.constant 0 : i32
    return %arg0, %c0_i32 : i32, i32
  }
  func.func @transform_1(%arg0: i32) -> (i32, i32) {
    %c0_i32 = arith.constant 0 : i32
    %c0_i32_0 = arith.constant 0 : i32
    %c0_i32_1 = arith.constant 0 : i32
    return %c0_i32, %c0_i32_0 : i32, i32
  }
  func.func @transform_2(%arg0: i32) -> (i32, i32) {
    %c0_i32 = arith.constant 0 : i32
    %c0_i32_0 = arith.constant 0 : i32
    %c0_i32_1 = arith.constant 0 : i32
    return %c0_i32, %c0_i32_0 : i32, i32
  }
  func.func @transform_3(%arg0: i32) -> (i32, i32) {
    %c0_i32 = arith.constant 0 : i32
    %c0_i32_0 = arith.constant 0 : i32
    return %arg0, %c0_i32 : i32, i32
  }
}

</mosaic_0001>

<llo_original>
// kernel: tpu_custom_call.1
$region0: #{tpu_custom_call.1}
  #allocation0 [shape = 'u32[]', space=smem, size = 0x4, offset = 0x4, fixed_abs, tag = 'smem constant byte address 0x4 - core index']
  #allocation1 [shape = 'u32[144,128]{1,0:T(1,128)}', space=vmem, size = 0x12000, scoped, tag = 'internal scratch']
  %s0 = inlined_call_operand.vmem [shape: f32[2,16], index: 0, kind: input, shape index: {}]
  %s1 = inlined_call_operand.vmem [shape: f32[80,32], index: 1, kind: input, shape index: {}]
  %s2 = inlined_call_operand.vmem [shape: f32[24,32], index: 2, kind: input, shape index: {}]
  %s3 = inlined_call_operand.hbm [shape: f32[2,8], index: 3, kind: output, shape index: {}]
  %s4 = sld [smem:[#allocation0]]
  $region22: #{tpu_custom_call.1} parent=0
    _
  %s6 = ssub.s32 1, %s4
  %s7 = scalar_select 0, %s6, %s4
  $region1: #{tpu_custom_call.1} parent=0
    #allocation2 [shape = 'u8[1024]{0}', space=vmem, size = 0x400, scoped, tag = 'output window, operand 0, single buffered']
    #allocation3 [shape = 's32[1]{0}', space=sflag, size = 0x4, scoped, tag = 'scoped memory for tpu_custom_call.1']
    %8 = vsyncpa [#allocation3], 0
    // Predicated region
    $region2: #{tpu_custom_call.1} parent=1 // pred_check
      _
    $region3: #{tpu_custom_call.1} parent=1 // pred_check_branch
      %10 = sbr.rel (0) target = $region5
    $region4: #{tpu_custom_call.1} parent=1 // pred_region
      _
    $region5: #{tpu_custom_call.1} parent=1 // pred_fallthru
      _
    // Predicated region
    $region6: #{tpu_custom_call.1} parent=1 // pred_check
      _
    $region7: #{tpu_custom_call.1} parent=1 // pred_check_branch
      %12 = sbr.rel (0) target = $region9
    $region8: #{tpu_custom_call.1} parent=1 // pred_region
      _
    $region9: #{tpu_custom_call.1} parent=1 // pred_fallthru
      _
    // Predicated region
    $region10: #{tpu_custom_call.1} parent=1 // pred_check
      _
    $region11: #{tpu_custom_call.1} parent=1 // pred_check_branch
      %14 = sbr.rel (0) target = $region13
    $region12: #{tpu_custom_call.1} parent=1 // pred_region
      _
    $region13: #{tpu_custom_call.1} parent=1 // pred_fallthru
      _
    %v15 = vld [vmem:[%s0] sm:$0x3]
    %v16 = vld [vmem:[%s1] sm:$0xff]
    %v17 = vld [vmem:[%s1 + $0x8] sm:$0xff]
    %v18 = vld [vmem:[%s1 + $0x10] sm:$0xff]
    %v19 = vld [vmem:[%s1 + $0x18] sm:$0xff]
    %v20 = vld [vmem:[%s1 + $0x20] sm:$0xff]
    %v21 = vld [vmem:[%s1 + $0x28] sm:$0xff]
    %v22 = vld [vmem:[%s1 + $0x30] sm:$0xff]
    %v23 = vld [vmem:[%s1 + $0x38] sm:$0xff]
    %v24 = vld [vmem:[%s1 + $0x40] sm:$0xff]
    %v25 = vld [vmem:[%s1 + $0x48] sm:$0xff]
    %v26 = vld [vmem:[%s2] sm:$0x1]
    %v27 = vld [vmem:[%s2 + $0x8] sm:$0x1]
    %v28 = vld [vmem:[%s2 + $0x10] sm:$0x1]
    %v29 = vlaneseq
    %v30 = vshrl.u32 %v29, 7
    %v31 = vsub.s32 0, %v30
    %v32 = vrot.slane %v26, %v31
    %vm33 = vcmask 130048
    %v35 = vsel %vm33, %v15, 0
    %37 = vmatprep.subr.mxu0 0.0
    %v38 = vand.u32 %v16, 4294901760
    %39 = vmatpush1.msra.mxu0 %v38
    %40 = vmatprep.subr.mxu0 0.0
    %v41 = vand.u32 %v17, 4294901760
    %42 = vmatpush1.msra.mxu0 %v41
    %43 = vmatprep.subr.mxu0 0.0
    %44 = vmatpush1.msra.mxu0 0.0
    %45 = vmatprep.subr.mxu0 0.0
    %46 = vmatpush1.msra.mxu0 0.0
    %47 = vmatprep.subr.mxu0 0.0
    %48 = vmatpush1.msra.mxu0 0.0
    %49 = vmatprep.subr.mxu0 0.0
    %50 = vmatpush1.msra.mxu0 0.0
    %51 = vmatprep.subr.mxu0 0.0
    %52 = vmatpush1.msra.mxu0 0.0
    %53 = vmatprep.subr.mxu0 0.0
    %54 = vmatpush1.msra.mxu0 0.0
    %55 = vmatprep.subr.mxu0 0.0
    %56 = vmatpush1.msra.mxu0 0.0
    %57 = vmatprep.subr.mxu0 0.0
    %58 = vmatpush1.msra.mxu0 0.0
    %59 = vmatprep.subr.mxu0 0.0
    %60 = vmatpush1.msra.mxu0 0.0
    %61 = vmatprep.subr.mxu0 0.0
    %62 = vmatpush1.msra.mxu0 0.0
    %63 = vmatprep.subr.mxu0 0.0
    %64 = vmatpush1.msra.mxu0 0.0
    %65 = vmatprep.subr.mxu0 0.0
    %66 = vmatpush1.msra.mxu0 0.0
    %67 = vmatprep.subr.mxu0 0.0
    %68 = vmatpush1.msra.mxu0 0.0
    %69 = vmatprep.subr.mxu0 0.0
    %70 = vmatpush1.msra.mxu0 0.0
    %71 = vmatprep.subr.mxu0 0.0
    %72 = vmatpush1.msra.mxu0 0.0
    %73 = vmatprep.subr.mxu0 0.0
    %74 = vmatpush1.msra.mxu0 0.0
    %75 = vmatprep.subr.mxu0 0.0
    %76 = vmatpush1.msra.mxu0 0.0
    %77 = vmatprep.subr.mxu0 0.0
    %78 = vmatpush1.msra.mxu0 0.0
    %79 = vmatprep.subr.mxu0 0.0
    %80 = vmatpush1.msra.mxu0 0.0
    %81 = vmatprep.subr.mxu0 0.0
    %82 = vmatpush1.msra.mxu0 0.0
    %83 = vmatprep.subr.mxu0 0.0
    %84 = vmatpush1.msra.mxu0 0.0
    %85 = vmatprep.subr.mxu0 0.0
    %86 = vmatpush1.msra.mxu0 0.0
    %87 = vmatprep.subr.mxu0 0.0
    %88 = vmatpush1.msra.mxu0 0.0
    %89 = vmatprep.subr.mxu0 0.0
    %90 = vmatpush1.msra.mxu0 0.0
    %91 = vmatprep.subr.mxu0 0.0
    %92 = vmatpush1.msra.mxu0 0.0
    %93 = vmatprep.subr.mxu0 0.0
    %94 = vmatpush1.msra.mxu0 0.0
    %95 = vmatprep.subr.mxu0 0.0
    %96 = vmatpush1.msra.mxu0 0.0
    %97 = vmatprep.subr.mxu0 0.0
    %98 = vmatpush1.msra.mxu0 0.0
    %99 = vmatprep.subr.mxu0 0.0
    %100 = vmatpush1.msra.mxu0 0.0
    %101 = vmatprep.subr.mxu0 0.0
    %102 = vmatpush1.msra.mxu0 0.0
    %103 = vmatprep.mubr.f32.mxu0 0.0
    %v104 = vand.u32 %v35, 4294901760
    %v105 = vsub.f32 %v35, %v104
    %v106 = vand.u32 %v105, 4294901760
    %v107 = vsub.f32 %v105, %v106
    %v108 = vand.u32 %v107, 4294901760
    %109 = vmatmul.mubr.f32.gmra.mrb[0].mxu0 %v108
    %v110 = vpop.f32.mrb[0].mxu0
    %v111 = vadd.f32 %v32, %v110
    %v112 = vpop.f32.mrb[0].mxu0
    %113 = vdwg.mxu0
    %114 = vmatprep.subr.mxu0 0.0
    %v115 = vand.u32 %v16, 4294901760
    %v116 = vsub.f32 %v16, %v115
    %v117 = vand.u32 %v116, 4294901760
    %v118 = vsub.f32 %v116, %v117
    %v119 = vand.u32 %v118, 4294901760
    %120 = vmatpush1.msra.mxu0 %v119
    %121 = vmatprep.subr.mxu0 0.0
    %v122 = vand.u32 %v17, 4294901760
    %v123 = vsub.f32 %v17, %v122
    %v124 = vand.u32 %v123, 4294901760
    %v125 = vsub.f32 %v123, %v124
    %v126 = vand.u32 %v125, 4294901760
    %127 = vmatpush1.msra.mxu0 %v126
    %128 = vmatprep.subr.mxu0 0.0
    %129 = vmatpush1.msra.mxu0 0.0
    %130 = vmatprep.subr.mxu0 0.0
    %131 = vmatpush1.msra.mxu0 0.0
    %132 = vmatprep.subr.mxu0 0.0
    %133 = vmatpush1.msra.mxu0 0.0
    %134 = vmatprep.subr.mxu0 0.0
    %135 = vmatpush1.msra.mxu0 0.0
    %136 = vmatprep.subr.mxu0 0.0
    %137 = vmatpush1.msra.mxu0 0.0
    %138 = vmatprep.subr.mxu0 0.0
    %139 = vmatpush1.msra.mxu0 0.0
    %140 = vmatprep.subr.mxu0 0.0
    %141 = vmatpush1.msra.mxu0 0.0
    %142 = vmatprep.subr.mxu0 0.0
    %143 = vmatpush1.msra.mxu0 0.0
    %144 = vmatprep.subr.mxu0 0.0
    %145 = vmatpush1.msra.mxu0 0.0
    %146 = vmatprep.subr.mxu0 0.0
    %147 = vmatpush1.msra.mxu0 0.0
    %148 = vmatprep.subr.mxu0 0.0
    %149 = vmatpush1.msra.mxu0 0.0
    %150 = vmatprep.subr.mxu0 0.0
    %151 = vmatpush1.msra.mxu0 0.0
    %152 = vmatprep.subr.mxu0 0.0
    %153 = vmatpush1.msra.mxu0 0.0
    %154 = vmatprep.subr.mxu0 0.0
    %155 = vmatpush1.msra.mxu0 0.0
    %156 = vmatprep.subr.mxu0 0.0
    %157 = vmatpush1.msra.mxu0 0.0
    %158 = vmatprep.subr.mxu0 0.0
    %159 = vmatpush1.msra.mxu0 0.0
    %160 = vmatprep.subr.mxu0 0.0
    %161 = vmatpush1.msra.mxu0 0.0
    %162 = vmatprep.subr.mxu0 0.0
    %163 = vmatpush1.msra.mxu0 0.0
    %164 = vmatprep.subr.mxu0 0.0
    %165 = vmatpush1.msra.mxu0 0.0
    %166 = vmatprep.subr.mxu0 0.0
    %167 = vmatpush1.msra.mxu0 0.0
    %168 = vmatprep.subr.mxu0 0.0
    %169 = vmatpush1.msra.mxu0 0.0
    %170 = vmatprep.subr.mxu0 0.0
    %171 = vmatpush1.msra.mxu0 0.0
    %172 = vmatprep.subr.mxu0 0.0
    %173 = vmatpush1.msra.mxu0 0.0
    %174 = vmatprep.subr.mxu0 0.0
    %175 = vmatpush1.msra.mxu0 0.0
    %176 = vmatprep.subr.mxu0 0.0
    %177 = vmatpush1.msra.mxu0 0.0
    %178 = vmatprep.subr.mxu0 0.0
    %179 = vmatpush1.msra.mxu0 0.0
    %180 = vmatprep.subr.mxu0 0.0
    %181 = vmatpush1.msra.mxu0 0.0
    %182 = vmatprep.subr.mxu0 0.0
    %183 = vmatpush1.msra.mxu0 0.0
    %184 = vmatprep.subr.mxu0 0.0
    %185 = vmatpush1.msra.mxu0 0.0
    %186 = vmatprep.subr.mxu0 0.0
    %187 = vmatpush1.msra.mxu0 0.0
    %188 = vmatprep.mubr.f32.mxu0 0.0
    %v189 = vand.u32 %v35, 4294901760
    %190 = vmatmul.mubr.f32.gmra.mrb[0].mxu0 %v189
    %v191 = vpop.f32.mrb[0].mxu0
    %v192 = vadd.f32 %v111, %v191
    %v193 = vpop.f32.mrb[0].mxu0
    %194 = vdwg.mxu0
    %195 = vmatprep.subr.mxu0 0.0
    %v196 = vand.u32 %v16, 4294901760
    %v197 = vsub.f32 %v16, %v196
    %198 = vmatpush1.msra.mxu0 %v197
    %199 = vmatprep.subr.mxu0 0.0
    %v200 = vand.u32 %v17, 4294901760
    %v201 = vsub.f32 %v17, %v200
    %202 = vmatpush1.msra.mxu0 %v201
    %203 = vmatprep.subr.mxu0 0.0
    %204 = vmatpush1.msra.mxu0 0.0
    %205 = vmatprep.subr.mxu0 0.0
    %206 = vmatpush1.msra.mxu0 0.0
    %207 = vmatprep.subr.mxu0 0.0
    %208 = vmatpush1.msra.mxu0 0.0
    %209 = vmatprep.subr.mxu0 0.0
    %210 = vmatpush1.msra.mxu0 0.0
    %211 = vmatprep.subr.mxu0 0.0
    %212 = vmatpush1.msra.mxu0 0.0
    %213 = vmatprep.subr.mxu0 0.0
    %214 = vmatpush1.msra.mxu0 0.0
    %215 = vmatprep.subr.mxu0 0.0
    %216 = vmatpush1.msra.mxu0 0.0
    %217 = vmatprep.subr.mxu0 0.0
    %218 = vmatpush1.msra.mxu0 0.0
    %219 = vmatprep.subr.mxu0 0.0
    %220 = vmatpush1.msra.mxu0 0.0
    %221 = vmatprep.subr.mxu0 0.0
    %222 = vmatpush1.msra.mxu0 0.0
    %223 = vmatprep.subr.mxu0 0.0
    %224 = vmatpush1.msra.mxu0 0.0
    %225 = vmatprep.subr.mxu0 0.0
    %226 = vmatpush1.msra.mxu0 0.0
    %227 = vmatprep.subr.mxu0 0.0
    %228 = vmatpush1.msra.mxu0 0.0
    %229 = vmatprep.subr.mxu0 0.0
    %230 = vmatpush1.msra.mxu0 0.0
    %231 = vmatprep.subr.mxu0 0.0
    %232 = vmatpush1.msra.mxu0 0.0
    %233 = vmatprep.subr.mxu0 0.0
    %234 = vmatpush1.msra.mxu0 0.0
    %235 = vmatprep.subr.mxu0 0.0
    %236 = vmatpush1.msra.mxu0 0.0
    %237 = vmatprep.subr.mxu0 0.0
    %238 = vmatpush1.msra.mxu0 0.0
    %239 = vmatprep.subr.mxu0 0.0
    %240 = vmatpush1.msra.mxu0 0.0
    %241 = vmatprep.subr.mxu0 0.0
    %242 = vmatpush1.msra.mxu0 0.0
    %243 = vmatprep.subr.mxu0 0.0
    %244 = vmatpush1.msra.mxu0 0.0
    %245 = vmatprep.subr.mxu0 0.0
    %246 = vmatpush1.msra.mxu0 0.0
    %247 = vmatprep.subr.mxu0 0.0
    %248 = vmatpush1.msra.mxu0 0.0
    %249 = vmatprep.subr.mxu0 0.0
    %250 = vmatpush1.msra.mxu0 0.0
    %251 = vmatprep.subr.mxu0 0.0
    %252 = vmatpush1.msra.mxu0 0.0
    %253 = vmatprep.subr.mxu0 0.0
    %254 = vmatpush1.msra.mxu0 0.0
    %255 = vmatprep.subr.mxu0 0.0
    %256 = vmatpush1.msra.mxu0 0.0
    %257 = vmatprep.subr.mxu0 0.0
    %258 = vmatpush1.msra.mxu0 0.0
    %259 = vmatprep.subr.mxu0 0.0
    %260 = vmatpush1.msra.mxu0 0.0
    %261 = vmatprep.subr.mxu0 0.0
    %262 = vmatpush1.msra.mxu0 0.0
    %263 = vmatprep.mubr.f32.mxu0 0.0
    %v264 = vand.u32 %v35, 4294901760
    %v265 = vsub.f32 %v35, %v264
    %266 = vmatmul.mubr.f32.gmra.mrb[0].mxu0 %v265
    %v267 = vpop.f32.mrb[0].mxu0
    %v268 = vadd.f32 %v192, %v267
    %v269 = vpop.f32.mrb[0].mxu0
    %270 = vdwg.mxu0
    %271 = vmatprep.subr.mxu0 0.0
    %v272 = vand.u32 %v16, 4294901760
    %273 = vmatpush1.msra.mxu0 %v272
    %274 = vmatprep.subr.mxu0 0.0
    %v275 = vand.u32 %v17, 4294901760
    %276 = vmatpush1.msra.mxu0 %v275
    %277 = vmatprep.subr.mxu0 0.0
    %278 = vmatpush1.msra.mxu0 0.0
    %279 = vmatprep.subr.mxu0 0.0
    %280 = vmatpush1.msra.mxu0 0.0
    %281 = vmatprep.subr.mxu0 0.0
    %282 = vmatpush1.msra.mxu0 0.0
    %283 = vmatprep.subr.mxu0 0.0
    %284 = vmatpush1.msra.mxu0 0.0
    %285 = vmatprep.subr.mxu0 0.0
    %286 = vmatpush1.msra.mxu0 0.0
    %287 = vmatprep.subr.mxu0 0.0
    %288 = vmatpush1.msra.mxu0 0.0
    %289 = vmatprep.subr.mxu0 0.0
    %290 = vmatpush1.msra.mxu0 0.0
    %291 = vmatprep.subr.mxu0 0.0
    %292 = vmatpush1.msra.mxu0 0.0
    %293 = vmatprep.subr.mxu0 0.0
    %294 = vmatpush1.msra.mxu0 0.0
    %295 = vmatprep.subr.mxu0 0.0
    %296 = vmatpush1.msra.mxu0 0.0
    %297 = vmatprep.subr.mxu0 0.0
    %298 = vmatpush1.msra.mxu0 0.0
    %299 = vmatprep.subr.mxu0 0.0
    %300 = vmatpush1.msra.mxu0 0.0
    %301 = vmatprep.subr.mxu0 0.0
    %302 = vmatpush1.msra.mxu0 0.0
    %303 = vmatprep.subr.mxu0 0.0
    %304 = vmatpush1.msra.mxu0 0.0
    %305 = vmatprep.subr.mxu0 0.0
    %306 = vmatpush1.msra.mxu0 0.0
    %307 = vmatprep.subr.mxu0 0.0
    %308 = vmatpush1.msra.mxu0 0.0
    %309 = vmatprep.subr.mxu0 0.0
    %310 = vmatpush1.msra.mxu0 0.0
    %311 = vmatprep.subr.mxu0 0.0
    %312 = vmatpush1.msra.mxu0 0.0
    %313 = vmatprep.subr.mxu0 0.0
    %314 = vmatpush1.msra.mxu0 0.0
    %315 = vmatprep.subr.mxu0 0.0
    %316 = vmatpush1.msra.mxu0 0.0
    %317 = vmatprep.subr.mxu0 0.0
    %318 = vmatpush1.msra.mxu0 0.0
    %319 = vmatprep.subr.mxu0 0.0
    %320 = vmatpush1.msra.mxu0 0.0
    %321 = vmatprep.subr.mxu0 0.0
    %322 = vmatpush1.msra.mxu0 0.0
    %323 = vmatprep.subr.mxu0 0.0
    %324 = vmatpush1.msra.mxu0 0.0
    %325 = vmatprep.subr.mxu0 0.0
    %326 = vmatpush1.msra.mxu0 0.0
    %327 = vmatprep.subr.mxu0 0.0
    %328 = vmatpush1.msra.mxu0 0.0
    %329 = vmatprep.subr.mxu0 0.0
    %330 = vmatpush1.msra.mxu0 0.0
    %331 = vmatprep.subr.mxu0 0.0
    %332 = vmatpush1.msra.mxu0 0.0
    %333 = vmatprep.subr.mxu0 0.0
    %334 = vmatpush1.msra.mxu0 0.0
    %335 = vmatprep.subr.mxu0 0.0
    %336 = vmatpush1.msra.mxu0 0.0
    %337 = vmatprep.mubr.f32.mxu0 0.0
    %v338 = vand.u32 %v35, 4294901760
    %v339 = vsub.f32 %v35, %v338
    %v340 = vand.u32 %v339, 4294901760
    %341 = vmatmul.mubr.f32.gmra.mrb[0].mxu0 %v340
    %v342 = vpop.f32.mrb[0].mxu0
    %v343 = vadd.f32 %v268, %v342
    %v344 = vpop.f32.mrb[0].mxu0
    %345 = vdwg.mxu0
    %346 = vmatprep.subr.mxu0 0.0
    %v347 = vand.u32 %v16, 4294901760
    %v348 = vsub.f32 %v16, %v347
    %v349 = vand.u32 %v348, 4294901760
    %350 = vmatpush1.msra.mxu0 %v349
    %351 = vmatprep.subr.mxu0 0.0
    %v352 = vand.u32 %v17, 4294901760
    %v353 = vsub.f32 %v17, %v352
    %v354 = vand.u32 %v353, 4294901760
    %355 = vmatpush1.msra.mxu0 %v354
    %356 = vmatprep.subr.mxu0 0.0
    %357 = vmatpush1.msra.mxu0 0.0
    %358 = vmatprep.subr.mxu0 0.0
    %359 = vmatpush1.msra.mxu0 0.0
    %360 = vmatprep.subr.mxu0 0.0
    %361 = vmatpush1.msra.mxu0 0.0
    %362 = vmatprep.subr.mxu0 0.0
    %363 = vmatpush1.msra.mxu0 0.0
    %364 = vmatprep.subr.mxu0 0.0
    %365 = vmatpush1.msra.mxu0 0.0
    %366 = vmatprep.subr.mxu0 0.0
    %367 = vmatpush1.msra.mxu0 0.0
    %368 = vmatprep.subr.mxu0 0.0
    %369 = vmatpush1.msra.mxu0 0.0
    %370 = vmatprep.subr.mxu0 0.0
    %371 = vmatpush1.msra.mxu0 0.0
    %372 = vmatprep.subr.mxu0 0.0
    %373 = vmatpush1.msra.mxu0 0.0
    %374 = vmatprep.subr.mxu0 0.0
    %375 = vmatpush1.msra.mxu0 0.0
    %376 = vmatprep.subr.mxu0 0.0
    %377 = vmatpush1.msra.mxu0 0.0
    %378 = vmatprep.subr.mxu0 0.0
    %379 = vmatpush1.msra.mxu0 0.0
    %380 = vmatprep.subr.mxu0 0.0
    %381 = vmatpush1.msra.mxu0 0.0
    %382 = vmatprep.subr.mxu0 0.0
    %383 = vmatpush1.msra.mxu0 0.0
    %384 = vmatprep.subr.mxu0 0.0
    %385 = vmatpush1.msra.mxu0 0.0
    %386 = vmatprep.subr.mxu0 0.0
    %387 = vmatpush1.msra.mxu0 0.0
    %388 = vmatprep.subr.mxu0 0.0
    %389 = vmatpush1.msra.mxu0 0.0
    %390 = vmatprep.subr.mxu0 0.0
    %391 = vmatpush1.msra.mxu0 0.0
    %392 = vmatprep.subr.mxu0 0.0
    %393 = vmatpush1.msra.mxu0 0.0
    %394 = vmatprep.subr.mxu0 0.0
    %395 = vmatpush1.msra.mxu0 0.0
    %396 = vmatprep.subr.mxu0 0.0
    %397 = vmatpush1.msra.mxu0 0.0
    %398 = vmatprep.subr.mxu0 0.0
    %399 = vmatpush1.msra.mxu0 0.0
    %400 = vmatprep.subr.mxu0 0.0
    %401 = vmatpush1.msra.mxu0 0.0
    %402 = vmatprep.subr.mxu0 0.0
    %403 = vmatpush1.msra.mxu0 0.0
    %404 = vmatprep.subr.mxu0 0.0
    %405 = vmatpush1.msra.mxu0 0.0
    %406 = vmatprep.subr.mxu0 0.0
    %407 = vmatpush1.msra.mxu0 0.0
    %408 = vmatprep.subr.mxu0 0.0
    %409 = vmatpush1.msra.mxu0 0.0
    %410 = vmatprep.subr.mxu0 0.0
    %411 = vmatpush1.msra.mxu0 0.0
    %412 = vmatprep.subr.mxu0 0.0
    %413 = vmatpush1.msra.mxu0 0.0
    %414 = vmatprep.subr.mxu0 0.0
    %415 = vmatpush1.msra.mxu0 0.0
    %416 = vmatprep.mubr.f32.mxu0 0.0
    %v417 = vand.u32 %v35, 4294901760
    %418 = vmatmul.mubr.f32.gmra.mrb[0].mxu0 %v417
    %v419 = vpop.f32.mrb[0].mxu0
    %v420 = vadd.f32 %v343, %v419
    %v421 = vpop.f32.mrb[0].mxu0
    %422 = vdwg.mxu0
    %423 = vmatprep.subr.mxu0 0.0
    %v424 = vand.u32 %v16, 4294901760
    %425 = vmatpush1.msra.mxu0 %v424
    %426 = vmatprep.subr.mxu0 0.0
    %v427 = vand.u32 %v17, 4294901760
    %428 = vmatpush1.msra.mxu0 %v427
    %429 = vmatprep.subr.mxu0 0.0
    %430 = vmatpush1.msra.mxu0 0.0
    %431 = vmatprep.subr.mxu0 0.0
    %432 = vmatpush1.msra.mxu0 0.0
    %433 = vmatprep.subr.mxu0 0.0
    %434 = vmatpush1.msra.mxu0 0.0
    %435 = vmatprep.subr.mxu0 0.0
    %436 = vmatpush1.msra.mxu0 0.0
    %437 = vmatprep.subr.mxu0 0.0
    %438 = vmatpush1.msra.mxu0 0.0
    %439 = vmatprep.subr.mxu0 0.0
    %440 = vmatpush1.msra.mxu0 0.0
    %441 = vmatprep.subr.mxu0 0.0
    %442 = vmatpush1.msra.mxu0 0.0
    %443 = vmatprep.subr.mxu0 0.0
    %444 = vmatpush1.msra.mxu0 0.0
    %445 = vmatprep.subr.mxu0 0.0
    %446 = vmatpush1.msra.mxu0 0.0
    %447 = vmatprep.subr.mxu0 0.0
    %448 = vmatpush1.msra.mxu0 0.0
    %449 = vmatprep.subr.mxu0 0.0
    %450 = vmatpush1.msra.mxu0 0.0
    %451 = vmatprep.subr.mxu0 0.0
    %452 = vmatpush1.msra.mxu0 0.0
    %453 = vmatprep.subr.mxu0 0.0
    %454 = vmatpush1.msra.mxu0 0.0
    %455 = vmatprep.subr.mxu0 0.0
    %456 = vmatpush1.msra.mxu0 0.0
    %457 = vmatprep.subr.mxu0 0.0
    %458 = vmatpush1.msra.mxu0 0.0
    %459 = vmatprep.subr.mxu0 0.0
    %460 = vmatpush1.msra.mxu0 0.0
    %461 = vmatprep.subr.mxu0 0.0
    %462 = vmatpush1.msra.mxu0 0.0
    %463 = vmatprep.subr.mxu0 0.0
    %464 = vmatpush1.msra.mxu0 0.0
    %465 = vmatprep.subr.mxu0 0.0
    %466 = vmatpush1.msra.mxu0 0.0
    %467 = vmatprep.subr.mxu0 0.0
    %468 = vmatpush1.msra.mxu0 0.0
    %469 = vmatprep.subr.mxu0 0.0
    %470 = vmatpush1.msra.mxu0 0.0
    %471 = vmatprep.subr.mxu0 0.0
    %472 = vmatpush1.msra.mxu0 0.0
    %473 = vmatprep.subr.mxu0 0.0
    %474 = vmatpush1.msra.mxu0 0.0
    %475 = vmatprep.subr.mxu0 0.0
    %476 = vmatpush1.msra.mxu0 0.0
    %477 = vmatprep.subr.mxu0 0.0
    %478 = vmatpush1.msra.mxu0 0.0
    %479 = vmatprep.subr.mxu0 0.0
    %480 = vmatpush1.msra.mxu0 0.0
    %481 = vmatprep.subr.mxu0 0.0
    %482 = vmatpush1.msra.mxu0 0.0
    %483 = vmatprep.subr.mxu0 0.0
    %484 = vmatpush1.msra.mxu0 0.0
    %485 = vmatprep.subr.mxu0 0.0
    %486 = vmatpush1.msra.mxu0 0.0
    %487 = vmatprep.subr.mxu0 0.0
    %488 = vmatpush1.msra.mxu0 0.0
    %489 = vmatprep.mubr.f32.mxu0 0.0
    %v490 = vand.u32 %v35, 4294901760
    %491 = vmatmul.mubr.f32.gmra.mrb[0].mxu0 %v490
    %v492 = vpop.f32.mrb[0].mxu0
    %v493 = vadd.f32 %v420, %v492
    %v494 = vpop.f32.mrb[0].mxu0
    %495 = vdwg.mxu0
    %vm496 = vcmp.gt.f32.partialorder %v493, 0.0
    %v497 = vmul.f32 %v493, 0.01
    %v498 = vsel %vm496, %v493, %v497
    %v499 = vlaneseq
    %v500 = vshrl.u32 %v499, 7
    %v501 = vsub.s32 0, %v500
    %v502 = vrot.slane %v27, %v501
    %vm503 = vcmask 261120
    %v505 = vsel %vm503, %v498, 0
    %507 = vmatprep.subr.mxu0 0.0
    %v508 = vand.u32 %v18, 4294901760
    %509 = vmatpush1.msra.mxu0 %v508
    %510 = vmatprep.subr.mxu0 0.0
    %v511 = vand.u32 %v19, 4294901760
    %512 = vmatpush1.msra.mxu0 %v511
    %513 = vmatprep.subr.mxu0 0.0
    %v514 = vand.u32 %v20, 4294901760
    %515 = vmatpush1.msra.mxu0 %v514
    %516 = vmatprep.subr.mxu0 0.0
    %v517 = vand.u32 %v21, 4294901760
    %518 = vmatpush1.msra.mxu0 %v517
    %519 = vmatprep.subr.mxu0 0.0
    %520 = vmatpush1.msra.mxu0 0.0
    %521 = vmatprep.subr.mxu0 0.0
    %522 = vmatpush1.msra.mxu0 0.0
    %523 = vmatprep.subr.mxu0 0.0
    %524 = vmatpush1.msra.mxu0 0.0
    %525 = vmatprep.subr.mxu0 0.0
    %526 = vmatpush1.msra.mxu0 0.0
    %527 = vmatprep.subr.mxu0 0.0
    %528 = vmatpush1.msra.mxu0 0.0
    %529 = vmatprep.subr.mxu0 0.0
    %530 = vmatpush1.msra.mxu0 0.0
    %531 = vmatprep.subr.mxu0 0.0
    %532 = vmatpush1.msra.mxu0 0.0
    %533 = vmatprep.subr.mxu0 0.0
    %534 = vmatpush1.msra.mxu0 0.0
    %535 = vmatprep.subr.mxu0 0.0
    %536 = vmatpush1.msra.mxu0 0.0
    %537 = vmatprep.subr.mxu0 0.0
    %538 = vmatpush1.msra.mxu0 0.0
    %539 = vmatprep.subr.mxu0 0.0
    %540 = vmatpush1.msra.mxu0 0.0
    %541 = vmatprep.subr.mxu0 0.0
    %542 = vmatpush1.msra.mxu0 0.0
    %543 = vmatprep.subr.mxu0 0.0
    %544 = vmatpush1.msra.mxu0 0.0
    %545 = vmatprep.subr.mxu0 0.0
    %546 = vmatpush1.msra.mxu0 0.0
    %547 = vmatprep.subr.mxu0 0.0
    %548 = vmatpush1.msra.mxu0 0.0
    %549 = vmatprep.subr.mxu0 0.0
    %550 = vmatpush1.msra.mxu0 0.0
    %551 = vmatprep.subr.mxu0 0.0
    %552 = vmatpush1.msra.mxu0 0.0
    %553 = vmatprep.subr.mxu0 0.0
    %554 = vmatpush1.msra.mxu0 0.0
    %555 = vmatprep.subr.mxu0 0.0
    %556 = vmatpush1.msra.mxu0 0.0
    %557 = vmatprep.subr.mxu0 0.0
    %558 = vmatpush1.msra.mxu0 0.0
    %559 = vmatprep.subr.mxu0 0.0
    %560 = vmatpush1.msra.mxu0 0.0
    %561 = vmatprep.subr.mxu0 0.0
    %562 = vmatpush1.msra.mxu0 0.0
    %563 = vmatprep.subr.mxu0 0.0
    %564 = vmatpush1.msra.mxu0 0.0
    %565 = vmatprep.subr.mxu0 0.0
    %566 = vmatpush1.msra.mxu0 0.0
    %567 = vmatprep.subr.mxu0 0.0
    %568 = vmatpush1.msra.mxu0 0.0
    %569 = vmatprep.subr.mxu0 0.0
    %570 = vmatpush1.msra.mxu0 0.0
    %571 = vmatprep.subr.mxu0 0.0
    %572 = vmatpush1.msra.mxu0 0.0
    %573 = vmatprep.subr.mxu0 0.0
    %574 = vmatpush1.msra.mxu0 0.0
    %575 = vmatprep.mubr.f32.mxu0 0.0
    %v576 = vand.u32 %v505, 4294901760
    %v577 = vsub.f32 %v505, %v576
    %v578 = vand.u32 %v577, 4294901760
    %v579 = vsub.f32 %v577, %v578
    %v580 = vand.u32 %v579, 4294901760
    %581 = vmatmul.mubr.f32.gmra.mrb[0].mxu0 %v580
    %v582 = vpop.f32.mrb[0].mxu0
    %v583 = vadd.f32 %v502, %v582
    %v584 = vpop.f32.mrb[0].mxu0
    %585 = vdwg.mxu0
    %586 = vmatprep.subr.mxu0 0.0
    %v587 = vand.u32 %v18, 4294901760
    %v588 = vsub.f32 %v18, %v587
    %v589 = vand.u32 %v588, 4294901760
    %v590 = vsub.f32 %v588, %v589
    %v591 = vand.u32 %v590, 4294901760
    %592 = vmatpush1.msra.mxu0 %v591
    %593 = vmatprep.subr.mxu0 0.0
    %v594 = vand.u32 %v19, 4294901760
    %v595 = vsub.f32 %v19, %v594
    %v596 = vand.u32 %v595, 4294901760
    %v597 = vsub.f32 %v595, %v596
    %v598 = vand.u32 %v597, 4294901760
    %599 = vmatpush1.msra.mxu0 %v598
    %600 = vmatprep.subr.mxu0 0.0
    %v601 = vand.u32 %v20, 4294901760
    %v602 = vsub.f32 %v20, %v601
    %v603 = vand.u32 %v602, 4294901760
    %v604 = vsub.f32 %v602, %v603
    %v605 = vand.u32 %v604, 4294901760
    %606 = vmatpush1.msra.mxu0 %v605
    %607 = vmatprep.subr.mxu0 0.0
    %v608 = vand.u32 %v21, 4294901760
    %v609 = vsub.f32 %v21, %v608
    %v610 = vand.u32 %v609, 4294901760
    %v611 = vsub.f32 %v609, %v610
    %v612 = vand.u32 %v611, 4294901760
    %613 = vmatpush1.msra.mxu0 %v612
    %614 = vmatprep.subr.mxu0 0.0
    %615 = vmatpush1.msra.mxu0 0.0
    %616 = vmatprep.subr.mxu0 0.0
    %617 = vmatpush1.msra.mxu0 0.0
    %618 = vmatprep.subr.mxu0 0.0
    %619 = vmatpush1.msra.mxu0 0.0
    %620 = vmatprep.subr.mxu0 0.0
    %621 = vmatpush1.msra.mxu0 0.0
    %622 = vmatprep.subr.mxu0 0.0
    %623 = vmatpush1.msra.mxu0 0.0
    %624 = vmatprep.subr.mxu0 0.0
    %625 = vmatpush1.msra.mxu0 0.0
    %626 = vmatprep.subr.mxu0 0.0
    %627 = vmatpush1.msra.mxu0 0.0
    %628 = vmatprep.subr.mxu0 0.0
    %629 = vmatpush1.msra.mxu0 0.0
    %630 = vmatprep.subr.mxu0 0.0
    %631 = vmatpush1.msra.mxu0 0.0
    %632 = vmatprep.subr.mxu0 0.0
    %633 = vmatpush1.msra.mxu0 0.0
    %634 = vmatprep.subr.mxu0 0.0
    %635 = vmatpush1.msra.mxu0 0.0
    %636 = vmatprep.subr.mxu0 0.0
    %637 = vmatpush1.msra.mxu0 0.0
    %638 = vmatprep.subr.mxu0 0.0
    %639 = vmatpush1.msra.mxu0 0.0
    %640 = vmatprep.subr.mxu0 0.0
    %641 = vmatpush1.msra.mxu0 0.0
    %642 = vmatprep.subr.mxu0 0.0
    %643 = vmatpush1.msra.mxu0 0.0
    %644 = vmatprep.subr.mxu0 0.0
    %645 = vmatpush1.msra.mxu0 0.0
    %646 = vmatprep.subr.mxu0 0.0
    %647 = vmatpush1.msra.mxu0 0.0
    %648 = vmatprep.subr.mxu0 0.0
    %649 = vmatpush1.msra.mxu0 0.0
    %650 = vmatprep.subr.mxu0 0.0
    %651 = vmatpush1.msra.mxu0 0.0
    %652 = vmatprep.subr.mxu0 0.0
    %653 = vmatpush1.msra.mxu0 0.0
    %654 = vmatprep.subr.mxu0 0.0
    %655 = vmatpush1.msra.mxu0 0.0
    %656 = vmatprep.subr.mxu0 0.0
    %657 = vmatpush1.msra.mxu0 0.0
    %658 = vmatprep.subr.mxu0 0.0
    %659 = vmatpush1.msra.mxu0 0.0
    %660 = vmatprep.subr.mxu0 0.0
    %661 = vmatpush1.msra.mxu0 0.0
    %662 = vmatprep.subr.mxu0 0.0
    %663 = vmatpush1.msra.mxu0 0.0
    %664 = vmatprep.subr.mxu0 0.0
    %665 = vmatpush1.msra.mxu0 0.0
    %666 = vmatprep.subr.mxu0 0.0
    %667 = vmatpush1.msra.mxu0 0.0
    %668 = vmatprep.subr.mxu0 0.0
    %669 = vmatpush1.msra.mxu0 0.0
    %670 = vmatprep.mubr.f32.mxu0 0.0
    %v671 = vand.u32 %v505, 4294901760
    %672 = vmatmul.mubr.f32.gmra.mrb[0].mxu0 %v671
    %v673 = vpop.f32.mrb[0].mxu0
    %v674 = vadd.f32 %v583, %v673
    %v675 = vpop.f32.mrb[0].mxu0
    %676 = vdwg.mxu0
    %677 = vmatprep.subr.mxu0 0.0
    %v678 = vand.u32 %v18, 4294901760
    %v679 = vsub.f32 %v18, %v678
    %680 = vmatpush1.msra.mxu0 %v679
    %681 = vmatprep.subr.mxu0 0.0
    %v682 = vand.u32 %v19, 4294901760
    %v683 = vsub.f32 %v19, %v682
    %684 = vmatpush1.msra.mxu0 %v683
    %685 = vmatprep.subr.mxu0 0.0
    %v686 = vand.u32 %v20, 4294901760
    %v687 = vsub.f32 %v20, %v686
    %688 = vmatpush1.msra.mxu0 %v687
    %689 = vmatprep.subr.mxu0 0.0
    %v690 = vand.u32 %v21, 4294901760
    %v691 = vsub.f32 %v21, %v690
    %692 = vmatpush1.msra.mxu0 %v691
    %693 = vmatprep.subr.mxu0 0.0
    %694 = vmatpush1.msra.mxu0 0.0
    %695 = vmatprep.subr.mxu0 0.0
    %696 = vmatpush1.msra.mxu0 0.0
    %697 = vmatprep.subr.mxu0 0.0
    %698 = vmatpush1.msra.mxu0 0.0
    %699 = vmatprep.subr.mxu0 0.0
    %700 = vmatpush1.msra.mxu0 0.0
    %701 = vmatprep.subr.mxu0 0.0
    %702 = vmatpush1.msra.mxu0 0.0
    %703 = vmatprep.subr.mxu0 0.0
    %704 = vmatpush1.msra.mxu0 0.0
    %705 = vmatprep.subr.mxu0 0.0
    %706 = vmatpush1.msra.mxu0 0.0
    %707 = vmatprep.subr.mxu0 0.0
    %708 = vmatpush1.msra.mxu0 0.0
    %709 = vmatprep.subr.mxu0 0.0
    %710 = vmatpush1.msra.mxu0 0.0
    %711 = vmatprep.subr.mxu0 0.0
    %712 = vmatpush1.msra.mxu0 0.0
    %713 = vmatprep.subr.mxu0 0.0
    %714 = vmatpush1.msra.mxu0 0.0
    %715 = vmatprep.subr.mxu0 0.0
    %716 = vmatpush1.msra.mxu0 0.0
    %717 = vmatprep.subr.mxu0 0.0
    %718 = vmatpush1.msra.mxu0 0.0
    %719 = vmatprep.subr.mxu0 0.0
    %720 = vmatpush1.msra.mxu0 0.0
    %721 = vmatprep.subr.mxu0 0.0
    %722 = vmatpush1.msra.mxu0 0.0
    %723 = vmatprep.subr.mxu0 0.0
    %724 = vmatpush1.msra.mxu0 0.0
    %725 = vmatprep.subr.mxu0 0.0
    %726 = vmatpush1.msra.mxu0 0.0
    %727 = vmatprep.subr.mxu0 0.0
    %728 = vmatpush1.msra.mxu0 0.0
    %729 = vmatprep.subr.mxu0 0.0
    %730 = vmatpush1.msra.mxu0 0.0
    %731 = vmatprep.subr.mxu0 0.0
    %732 = vmatpush1.msra.mxu0 0.0
    %733 = vmatprep.subr.mxu0 0.0
    %734 = vmatpush1.msra.mxu0 0.0
    %735 = vmatprep.subr.mxu0 0.0
    %736 = vmatpush1.msra.mxu0 0.0
    %737 = vmatprep.subr.mxu0 0.0
    %738 = vmatpush1.msra.mxu0 0.0
    %739 = vmatprep.subr.mxu0 0.0
    %740 = vmatpush1.msra.mxu0 0.0
    %741 = vmatprep.subr.mxu0 0.0
    %742 = vmatpush1.msra.mxu0 0.0
    %743 = vmatprep.subr.mxu0 0.0
    %744 = vmatpush1.msra.mxu0 0.0
    %745 = vmatprep.subr.mxu0 0.0
    %746 = vmatpush1.msra.mxu0 0.0
    %747 = vmatprep.subr.mxu0 0.0
    %748 = vmatpush1.msra.mxu0 0.0
    %749 = vmatprep.mubr.f32.mxu0 0.0
    %v750 = vand.u32 %v505, 4294901760
    %v751 = vsub.f32 %v505, %v750
    %752 = vmatmul.mubr.f32.gmra.mrb[0].mxu0 %v751
    %v753 = vpop.f32.mrb[0].mxu0
    %v754 = vadd.f32 %v674, %v753
    %v755 = vpop.f32.mrb[0].mxu0
    %756 = vdwg.mxu0
    %757 = vmatprep.subr.mxu0 0.0
    %v758 = vand.u32 %v18, 4294901760
    %759 = vmatpush1.msra.mxu0 %v758
    %760 = vmatprep.subr.mxu0 0.0
    %v761 = vand.u32 %v19, 4294901760
    %762 = vmatpush1.msra.mxu0 %v761
    %763 = vmatprep.subr.mxu0 0.0
    %v764 = vand.u32 %v20, 4294901760
    %765 = vmatpush1.msra.mxu0 %v764
    %766 = vmatprep.subr.mxu0 0.0
    %v767 = vand.u32 %v21, 4294901760
    %768 = vmatpush1.msra.mxu0 %v767
    %769 = vmatprep.subr.mxu0 0.0
    %770 = vmatpush1.msra.mxu0 0.0
    %771 = vmatprep.subr.mxu0 0.0
    %772 = vmatpush1.msra.mxu0 0.0
    %773 = vmatprep.subr.mxu0 0.0
    %774 = vmatpush1.msra.mxu0 0.0
    %775 = vmatprep.subr.mxu0 0.0
    %776 = vmatpush1.msra.mxu0 0.0
    %777 = vmatprep.subr.mxu0 0.0
    %778 = vmatpush1.msra.mxu0 0.0
    %779 = vmatprep.subr.mxu0 0.0
    %780 = vmatpush1.msra.mxu0 0.0
    %781 = vmatprep.subr.mxu0 0.0
    %782 = vmatpush1.msra.mxu0 0.0
    %783 = vmatprep.subr.mxu0 0.0
    %784 = vmatpush1.msra.mxu0 0.0
    %785 = vmatprep.subr.mxu0 0.0
    %786 = vmatpush1.msra.mxu0 0.0
    %787 = vmatprep.subr.mxu0 0.0
    %788 = vmatpush1.msra.mxu0 0.0
    %789 = vmatprep.subr.mxu0 0.0
    %790 = vmatpush1.msra.mxu0 0.0
    %791 = vmatprep.subr.mxu0 0.0
    %792 = vmatpush1.msra.mxu0 0.0
    %793 = vmatprep.subr.mxu0 0.0
    %794 = vmatpush1.msra.mxu0 0.0
    %795 = vmatprep.subr.mxu0 0.0
    %796 = vmatpush1.msra.mxu0 0.0
    %797 = vmatprep.subr.mxu0 0.0
    %798 = vmatpush1.msra.mxu0 0.0
    %799 = vmatprep.subr.mxu0 0.0
    %800 = vmatpush1.msra.mxu0 0.0
    %801 = vmatprep.subr.mxu0 0.0
    %802 = vmatpush1.msra.mxu0 0.0
    %803 = vmatprep.subr.mxu0 0.0
    %804 = vmatpush1.msra.mxu0 0.0
    %805 = vmatprep.subr.mxu0 0.0
    %806 = vmatpush1.msra.mxu0 0.0
    %807 = vmatprep.subr.mxu0 0.0
    %808 = vmatpush1.msra.mxu0 0.0
    %809 = vmatprep.subr.mxu0 0.0
    %810 = vmatpush1.msra.mxu0 0.0
    %811 = vmatprep.subr.mxu0 0.0
    %812 = vmatpush1.msra.mxu0 0.0
    %813 = vmatprep.subr.mxu0 0.0
    %814 = vmatpush1.msra.mxu0 0.0
    %815 = vmatprep.subr.mxu0 0.0
    %816 = vmatpush1.msra.mxu0 0.0
    %817 = vmatprep.subr.mxu0 0.0
    %818 = vmatpush1.msra.mxu0 0.0
    %819 = vmatprep.subr.mxu0 0.0
    %820 = vmatpush1.msra.mxu0 0.0
    %821 = vmatprep.subr.mxu0 0.0
    %822 = vmatpush1.msra.mxu0 0.0
    %823 = vmatprep.subr.mxu0 0.0
    %824 = vmatpush1.msra.mxu0 0.0
    %825 = vmatprep.mubr.f32.mxu0 0.0
    %v826 = vand.u32 %v505, 4294901760
    %v827 = vsub.f32 %v505, %v826
    %v828 = vand.u32 %v827, 4294901760
    %829 = vmatmul.mubr.f32.gmra.mrb[0].mxu0 %v828
    %v830 = vpop.f32.mrb[0].mxu0
    %v831 = vadd.f32 %v754, %v830
    %v832 = vpop.f32.mrb[0].mxu0
    %833 = vdwg.mxu0
    %834 = vmatprep.subr.mxu0 0.0
    %v835 = vand.u32 %v18, 4294901760
    %v836 = vsub.f32 %v18, %v835
    %v837 = vand.u32 %v836, 4294901760
    %838 = vmatpush1.msra.mxu0 %v837
    %839 = vmatprep.subr.mxu0 0.0
    %v840 = vand.u32 %v19, 4294901760
    %v841 = vsub.f32 %v19, %v840
    %v842 = vand.u32 %v841, 4294901760
    %843 = vmatpush1.msra.mxu0 %v842
    %844 = vmatprep.subr.mxu0 0.0
    %v845 = vand.u32 %v20, 4294901760
    %v846 = vsub.f32 %v20, %v845
    %v847 = vand.u32 %v846, 4294901760
    %848 = vmatpush1.msra.mxu0 %v847
    %849 = vmatprep.subr.mxu0 0.0
    %v850 = vand.u32 %v21, 4294901760
    %v851 = vsub.f32 %v21, %v850
    %v852 = vand.u32 %v851, 4294901760
    %853 = vmatpush1.msra.mxu0 %v852
    %854 = vmatprep.subr.mxu0 0.0
    %855 = vmatpush1.msra.mxu0 0.0
    %856 = vmatprep.subr.mxu0 0.0
    %857 = vmatpush1.msra.mxu0 0.0
    %858 = vmatprep.subr.mxu0 0.0
    %859 = vmatpush1.msra.mxu0 0.0
    %860 = vmatprep.subr.mxu0 0.0
    %861 = vmatpush1.msra.mxu0 0.0
    %862 = vmatprep.subr.mxu0 0.0
    %863 = vmatpush1.msra.mxu0 0.0
    %864 = vmatprep.subr.mxu0 0.0
    %865 = vmatpush1.msra.mxu0 0.0
    %866 = vmatprep.subr.mxu0 0.0
    %867 = vmatpush1.msra.mxu0 0.0
    %868 = vmatprep.subr.mxu0 0.0
    %869 = vmatpush1.msra.mxu0 0.0
    %870 = vmatprep.subr.mxu0 0.0
    %871 = vmatpush1.msra.mxu0 0.0
    %872 = vmatprep.subr.mxu0 0.0
    %873 = vmatpush1.msra.mxu0 0.0
    %874 = vmatprep.subr.mxu0 0.0
    %875 = vmatpush1.msra.mxu0 0.0
    %876 = vmatprep.subr.mxu0 0.0
    %877 = vmatpush1.msra.mxu0 0.0
    %878 = vmatprep.subr.mxu0 0.0
    %879 = vmatpush1.msra.mxu0 0.0
    %880 = vmatprep.subr.mxu0 0.0
    %881 = vmatpush1.msra.mxu0 0.0
    %882 = vmatprep.subr.mxu0 0.0
    %883 = vmatpush1.msra.mxu0 0.0
    %884 = vmatprep.subr.mxu0 0.0
    %885 = vmatpush1.msra.mxu0 0.0
    %886 = vmatprep.subr.mxu0 0.0
    %887 = vmatpush1.msra.mxu0 0.0
    %888 = vmatprep.subr.mxu0 0.0
    %889 = vmatpush1.msra.mxu0 0.0
    %890 = vmatprep.subr.mxu0 0.0
    %891 = vmatpush1.msra.mxu0 0.0
    %892 = vmatprep.subr.mxu0 0.0
    %893 = vmatpush1.msra.mxu0 0.0
    %894 = vmatprep.subr.mxu0 0.0
    %895 = vmatpush1.msra.mxu0 0.0
    %896 = vmatprep.subr.mxu0 0.0
    %897 = vmatpush1.msra.mxu0 0.0
    %898 = vmatprep.subr.mxu0 0.0
    %899 = vmatpush1.msra.mxu0 0.0
    %900 = vmatprep.subr.mxu0 0.0
    %901 = vmatpush1.msra.mxu0 0.0
    %902 = vmatprep.subr.mxu0 0.0
    %903 = vmatpush1.msra.mxu0 0.0
    %904 = vmatprep.subr.mxu0 0.0
    %905 = vmatpush1.msra.mxu0 0.0
    %906 = vmatprep.subr.mxu0 0.0
    %907 = vmatpush1.msra.mxu0 0.0
    %908 = vmatprep.subr.mxu0 0.0
    %909 = vmatpush1.msra.mxu0 0.0
    %910 = vmatprep.mubr.f32.mxu0 0.0
    %v911 = vand.u32 %v505, 4294901760
    %912 = vmatmul.mubr.f32.gmra.mrb[0].mxu0 %v911
    %v913 = vpop.f32.mrb[0].mxu0
    %v914 = vadd.f32 %v831, %v913
    %v915 = vpop.f32.mrb[0].mxu0
    %916 = vdwg.mxu0
    %917 = vmatprep.subr.mxu0 0.0
    %v918 = vand.u32 %v18, 4294901760
    %919 = vmatpush1.msra.mxu0 %v918
    %920 = vmatprep.subr.mxu0 0.0
    %v921 = vand.u32 %v19, 4294901760
    %922 = vmatpush1.msra.mxu0 %v921
    %923 = vmatprep.subr.mxu0 0.0
    %v924 = vand.u32 %v20, 4294901760
    %925 = vmatpush1.msra.mxu0 %v924
    %926 = vmatprep.subr.mxu0 0.0
    %v927 = vand.u32 %v21, 4294901760
    %928 = vmatpush1.msra.mxu0 %v927
    %929 = vmatprep.subr.mxu0 0.0
    %930 = vmatpush1.msra.mxu0 0.0
    %931 = vmatprep.subr.mxu0 0.0
    %932 = vmatpush1.msra.mxu0 0.0
    %933 = vmatprep.subr.mxu0 0.0
    %934 = vmatpush1.msra.mxu0 0.0
    %935 = vmatprep.subr.mxu0 0.0
    %936 = vmatpush1.msra.mxu0 0.0
    %937 = vmatprep.subr.mxu0 0.0
    %938 = vmatpush1.msra.mxu0 0.0
    %939 = vmatprep.subr.mxu0 0.0
    %940 = vmatpush1.msra.mxu0 0.0
    %941 = vmatprep.subr.mxu0 0.0
    %942 = vmatpush1.msra.mxu0 0.0
    %943 = vmatprep.subr.mxu0 0.0
    %944 = vmatpush1.msra.mxu0 0.0
    %945 = vmatprep.subr.mxu0 0.0
    %946 = vmatpush1.msra.mxu0 0.0
    %947 = vmatprep.subr.mxu0 0.0
    %948 = vmatpush1.msra.mxu0 0.0
    %949 = vmatprep.subr.mxu0 0.0
    %950 = vmatpush1.msra.mxu0 0.0
    %951 = vmatprep.subr.mxu0 0.0
    %952 = vmatpush1.msra.mxu0 0.0
    %953 = vmatprep.subr.mxu0 0.0
    %954 = vmatpush1.msra.mxu0 0.0
    %955 = vmatprep.subr.mxu0 0.0
    %956 = vmatpush1.msra.mxu0 0.0
    %957 = vmatprep.subr.mxu0 0.0
    %958 = vmatpush1.msra.mxu0 0.0
    %959 = vmatprep.subr.mxu0 0.0
    %960 = vmatpush1.msra.mxu0 0.0
    %961 = vmatprep.subr.mxu0 0.0
    %962 = vmatpush1.msra.mxu0 0.0
    %963 = vmatprep.subr.mxu0 0.0
    %964 = vmatpush1.msra.mxu0 0.0
    %965 = vmatprep.subr.mxu0 0.0
    %966 = vmatpush1.msra.mxu0 0.0
    %967 = vmatprep.subr.mxu0 0.0
    %968 = vmatpush1.msra.mxu0 0.0
    %969 = vmatprep.subr.mxu0 0.0
    %970 = vmatpush1.msra.mxu0 0.0
    %971 = vmatprep.subr.mxu0 0.0
    %972 = vmatpush1.msra.mxu0 0.0
    %973 = vmatprep.subr.mxu0 0.0
    %974 = vmatpush1.msra.mxu0 0.0
    %975 = vmatprep.subr.mxu0 0.0
    %976 = vmatpush1.msra.mxu0 0.0
    %977 = vmatprep.subr.mxu0 0.0
    %978 = vmatpush1.msra.mxu0 0.0
    %979 = vmatprep.subr.mxu0 0.0
    %980 = vmatpush1.msra.mxu0 0.0
    %981 = vmatprep.subr.mxu0 0.0
    %982 = vmatpush1.msra.mxu0 0.0
    %983 = vmatprep.subr.mxu0 0.0
    %984 = vmatpush1.msra.mxu0 0.0
    %985 = vmatprep.mubr.f32.mxu0 0.0
    %v986 = vand.u32 %v505, 4294901760
    %987 = vmatmul.mubr.f32.gmra.mrb[0].mxu0 %v986
    %v988 = vpop.f32.mrb[0].mxu0
    %v989 = vadd.f32 %v914, %v988
    %v990 = vpop.f32.mrb[0].mxu0
    %991 = vdwg.mxu0
    %vm992 = vcmp.gt.f32.partialorder %v989, 0.0
    %v993 = vmul.f32 %v989, 0.01
    %v994 = vsel %vm992, %v989, %v993
    %v995 = vlaneseq
    %v996 = vshrl.u32 %v995, 7
    %v997 = vsub.s32 0, %v996
    %v998 = vrot.slane %v28, %v997
    %v1000 = vsel %vm503, %v994, 0
    %1002 = vmatprep.subr.mxu0 0.0
    %v1003 = vand.u32 %v22, 4294901760
    %1004 = vmatpush1.msra.mxu0 %v1003
    %1005 = vmatprep.subr.mxu0 0.0
    %v1006 = vand.u32 %v23, 4294901760
    %1007 = vmatpush1.msra.mxu0 %v1006
    %1008 = vmatprep.subr.mxu0 0.0
    %v1009 = vand.u32 %v24, 4294901760
    %1010 = vmatpush1.msra.mxu0 %v1009
    %1011 = vmatprep.subr.mxu0 0.0
    %v1012 = vand.u32 %v25, 4294901760
    %1013 = vmatpush1.msra.mxu0 %v1012
    %1014 = vmatprep.subr.mxu0 0.0
    %1015 = vmatpush1.msra.mxu0 0.0
    %1016 = vmatprep.subr.mxu0 0.0
    %1017 = vmatpush1.msra.mxu0 0.0
    %1018 = vmatprep.subr.mxu0 0.0
    %1019 = vmatpush1.msra.mxu0 0.0
    %1020 = vmatprep.subr.mxu0 0.0
    %1021 = vmatpush1.msra.mxu0 0.0
    %1022 = vmatprep.subr.mxu0 0.0
    %1023 = vmatpush1.msra.mxu0 0.0
    %1024 = vmatprep.subr.mxu0 0.0
    %1025 = vmatpush1.msra.mxu0 0.0
    %1026 = vmatprep.subr.mxu0 0.0
    %1027 = vmatpush1.msra.mxu0 0.0
    %1028 = vmatprep.subr.mxu0 0.0
    %1029 = vmatpush1.msra.mxu0 0.0
    %1030 = vmatprep.subr.mxu0 0.0
    %1031 = vmatpush1.msra.mxu0 0.0
    %1032 = vmatprep.subr.mxu0 0.0
    %1033 = vmatpush1.msra.mxu0 0.0
    %1034 = vmatprep.subr.mxu0 0.0
    %1035 = vmatpush1.msra.mxu0 0.0
    %1036 = vmatprep.subr.mxu0 0.0
    %1037 = vmatpush1.msra.mxu0 0.0
    %1038 = vmatprep.subr.mxu0 0.0
    %1039 = vmatpush1.msra.mxu0 0.0
    %1040 = vmatprep.subr.mxu0 0.0
    %1041 = vmatpush1.msra.mxu0 0.0
    %1042 = vmatprep.subr.mxu0 0.0
    %1043 = vmatpush1.msra.mxu0 0.0
    %1044 = vmatprep.subr.mxu0 0.0
    %1045 = vmatpush1.msra.mxu0 0.0
    %1046 = vmatprep.subr.mxu0 0.0
    %1047 = vmatpush1.msra.mxu0 0.0
    %1048 = vmatprep.subr.mxu0 0.0
    %1049 = vmatpush1.msra.mxu0 0.0
    %1050 = vmatprep.subr.mxu0 0.0
    %1051 = vmatpush1.msra.mxu0 0.0
    %1052 = vmatprep.subr.mxu0 0.0
    %1053 = vmatpush1.msra.mxu0 0.0
    %1054 = vmatprep.subr.mxu0 0.0
    %1055 = vmatpush1.msra.mxu0 0.0
    %1056 = vmatprep.subr.mxu0 0.0
    %1057 = vmatpush1.msra.mxu0 0.0
    %1058 = vmatprep.subr.mxu0 0.0
    %1059 = vmatpush1.msra.mxu0 0.0
    %1060 = vmatprep.subr.mxu0 0.0
    %1061 = vmatpush1.msra.mxu0 0.0
    %1062 = vmatprep.subr.mxu0 0.0
    %1063 = vmatpush1.msra.mxu0 0.0
    %1064 = vmatprep.subr.mxu0 0.0
    %1065 = vmatpush1.msra.mxu0 0.0
    %1066 = vmatprep.subr.mxu0 0.0
    %1067 = vmatpush1.msra.mxu0 0.0
    %1068 = vmatprep.subr.mxu0 0.0
    %1069 = vmatpush1.msra.mxu0 0.0
    %1070 = vmatprep.mubr.f32.mxu0 0.0
    %v1071 = vand.u32 %v1000, 4294901760
    %v1072 = vsub.f32 %v1000, %v1071
    %v1073 = vand.u32 %v1072, 4294901760
    %v1074 = vsub.f32 %v1072, %v1073
    %v1075 = vand.u32 %v1074, 4294901760
    %1076 = vmatmul.mubr.f32.gmra.mrb[0].mxu0 %v1075
    %v1077 = vpop.f32.mrb[0].mxu0
    %v1078 = vadd.f32 %v998, %v1077
    %v1079 = vpop.f32.mrb[0].mxu0
    %1080 = vdwg.mxu0
    %1081 = vmatprep.subr.mxu0 0.0
    %v1082 = vand.u32 %v22, 4294901760
    %v1083 = vsub.f32 %v22, %v1082
    %v1084 = vand.u32 %v1083, 4294901760
    %v1085 = vsub.f32 %v1083, %v1084
    %v1086 = vand.u32 %v1085, 4294901760
    %1087 = vmatpush1.msra.mxu0 %v1086
    %1088 = vmatprep.subr.mxu0 0.0
    %v1089 = vand.u32 %v23, 4294901760
    %v1090 = vsub.f32 %v23, %v1089
    %v1091 = vand.u32 %v1090, 4294901760
    %v1092 = vsub.f32 %v1090, %v1091
    %v1093 = vand.u32 %v1092, 4294901760
    %1094 = vmatpush1.msra.mxu0 %v1093
    %1095 = vmatprep.subr.mxu0 0.0
    %v1096 = vand.u32 %v24, 4294901760
    %v1097 = vsub.f32 %v24, %v1096
    %v1098 = vand.u32 %v1097, 4294901760
    %v1099 = vsub.f32 %v1097, %v1098
    %v1100 = vand.u32 %v1099, 4294901760
    %1101 = vmatpush1.msra.mxu0 %v1100
    %1102 = vmatprep.subr.mxu0 0.0
    %v1103 = vand.u32 %v25, 4294901760
    %v1104 = vsub.f32 %v25, %v1103
    %v1105 = vand.u32 %v1104, 4294901760
    %v1106 = vsub.f32 %v1104, %v1105
    %v1107 = vand.u32 %v1106, 4294901760
    %1108 = vmatpush1.msra.mxu0 %v1107
    %1109 = vmatprep.subr.mxu0 0.0
    %1110 = vmatpush1.msra.mxu0 0.0
    %1111 = vmatprep.subr.mxu0 0.0
    %1112 = vmatpush1.msra.mxu0 0.0
    %1113 = vmatprep.subr.mxu0 0.0
    %1114 = vmatpush1.msra.mxu0 0.0
    %1115 = vmatprep.subr.mxu0 0.0
    %1116 = vmatpush1.msra.mxu0 0.0
    %1117 = vmatprep.subr.mxu0 0.0
    %1118 = vmatpush1.msra.mxu0 0.0
    %1119 = vmatprep.subr.mxu0 0.0
    %1120 = vmatpush1.msra.mxu0 0.0
    %1121 = vmatprep.subr.mxu0 0.0
    %1122 = vmatpush1.msra.mxu0 0.0
    %1123 = vmatprep.subr.mxu0 0.0
    %1124 = vmatpush1.msra.mxu0 0.0
    %1125 = vmatprep.subr.mxu0 0.0
    %1126 = vmatpush1.msra.mxu0 0.0
    %1127 = vmatprep.subr.mxu0 0.0
    %1128 = vmatpush1.msra.mxu0 0.0
    %1129 = vmatprep.subr.mxu0 0.0
    %1130 = vmatpush1.msra.mxu0 0.0
    %1131 = vmatprep.subr.mxu0 0.0
    %1132 = vmatpush1.msra.mxu0 0.0
    %1133 = vmatprep.subr.mxu0 0.0
    %1134 = vmatpush1.msra.mxu0 0.0
    %1135 = vmatprep.subr.mxu0 0.0
    %1136 = vmatpush1.msra.mxu0 0.0
    %1137 = vmatprep.subr.mxu0 0.0
    %1138 = vmatpush1.msra.mxu0 0.0
    %1139 = vmatprep.subr.mxu0 0.0
    %1140 = vmatpush1.msra.mxu0 0.0
    %1141 = vmatprep.subr.mxu0 0.0
    %1142 = vmatpush1.msra.mxu0 0.0
    %1143 = vmatprep.subr.mxu0 0.0
    %1144 = vmatpush1.msra.mxu0 0.0
    %1145 = vmatprep.subr.mxu0 0.0
    %1146 = vmatpush1.msra.mxu0 0.0
    %1147 = vmatprep.subr.mxu0 0.0
    %1148 = vmatpush1.msra.mxu0 0.0
    %1149 = vmatprep.subr.mxu0 0.0
    %1150 = vmatpush1.msra.mxu0 0.0
    %1151 = vmatprep.subr.mxu0 0.0
    %1152 = vmatpush1.msra.mxu0 0.0
    %1153 = vmatprep.subr.mxu0 0.0
    %1154 = vmatpush1.msra.mxu0 0.0
    %1155 = vmatprep.subr.mxu0 0.0
    %1156 = vmatpush1.msra.mxu0 0.0
    %1157 = vmatprep.subr.mxu0 0.0
    %1158 = vmatpush1.msra.mxu0 0.0
    %1159 = vmatprep.subr.mxu0 0.0
    %1160 = vmatpush1.msra.mxu0 0.0
    %1161 = vmatprep.subr.mxu0 0.0
    %1162 = vmatpush1.msra.mxu0 0.0
    %1163 = vmatprep.subr.mxu0 0.0
    %1164 = vmatpush1.msra.mxu0 0.0
    %1165 = vmatprep.mubr.f32.mxu0 0.0
    %v1166 = vand.u32 %v1000, 4294901760
    %1167 = vmatmul.mubr.f32.gmra.mrb[0].mxu0 %v1166
    %v1168 = vpop.f32.mrb[0].mxu0
    %v1169 = vadd.f32 %v1078, %v1168
    %v1170 = vpop.f32.mrb[0].mxu0
    %1171 = vdwg.mxu0
    %1172 = vmatprep.subr.mxu0 0.0
    %v1173 = vand.u32 %v22, 4294901760
    %v1174 = vsub.f32 %v22, %v1173
    %1175 = vmatpush1.msra.mxu0 %v1174
    %1176 = vmatprep.subr.mxu0 0.0
    %v1177 = vand.u32 %v23, 4294901760
    %v1178 = vsub.f32 %v23, %v1177
    %1179 = vmatpush1.msra.mxu0 %v1178
    %1180 = vmatprep.subr.mxu0 0.0
    %v1181 = vand.u32 %v24, 4294901760
    %v1182 = vsub.f32 %v24, %v1181
    %1183 = vmatpush1.msra.mxu0 %v1182
    %1184 = vmatprep.subr.mxu0 0.0
    %v1185 = vand.u32 %v25, 4294901760
    %v1186 = vsub.f32 %v25, %v1185
    %1187 = vmatpush1.msra.mxu0 %v1186
    %1188 = vmatprep.subr.mxu0 0.0
    %1189 = vmatpush1.msra.mxu0 0.0
    %1190 = vmatprep.subr.mxu0 0.0
    %1191 = vmatpush1.msra.mxu0 0.0
    %1192 = vmatprep.subr.mxu0 0.0
    %1193 = vmatpush1.msra.mxu0 0.0
    %1194 = vmatprep.subr.mxu0 0.0
    %1195 = vmatpush1.msra.mxu0 0.0
    %1196 = vmatprep.subr.mxu0 0.0
    %1197 = vmatpush1.msra.mxu0 0.0
    %1198 = vmatprep.subr.mxu0 0.0
    %1199 = vmatpush1.msra.mxu0 0.0
    %1200 = vmatprep.subr.mxu0 0.0
    %1201 = vmatpush1.msra.mxu0 0.0
    %1202 = vmatprep.subr.mxu0 0.0
    %1203 = vmatpush1.msra.mxu0 0.0
    %1204 = vmatprep.subr.mxu0 0.0
    %1205 = vmatpush1.msra.mxu0 0.0
    %1206 = vmatprep.subr.mxu0 0.0
    %1207 = vmatpush1.msra.mxu0 0.0
    %1208 = vmatprep.subr.mxu0 0.0
    %1209 = vmatpush1.msra.mxu0 0.0
    %1210 = vmatprep.subr.mxu0 0.0
    %1211 = vmatpush1.msra.mxu0 0.0
    %1212 = vmatprep.subr.mxu0 0.0
    %1213 = vmatpush1.msra.mxu0 0.0
    %1214 = vmatprep.subr.mxu0 0.0
    %1215 = vmatpush1.msra.mxu0 0.0
    %1216 = vmatprep.subr.mxu0 0.0
    %1217 = vmatpush1.msra.mxu0 0.0
    %1218 = vmatprep.subr.mxu0 0.0
    %1219 = vmatpush1.msra.mxu0 0.0
    %1220 = vmatprep.subr.mxu0 0.0
    %1221 = vmatpush1.msra.mxu0 0.0
    %1222 = vmatprep.subr.mxu0 0.0
    %1223 = vmatpush1.msra.mxu0 0.0
    %1224 = vmatprep.subr.mxu0 0.0
    %1225 = vmatpush1.msra.mxu0 0.0
    %1226 = vmatprep.subr.mxu0 0.0
    %1227 = vmatpush1.msra.mxu0 0.0
    %1228 = vmatprep.subr.mxu0 0.0
    %1229 = vmatpush1.msra.mxu0 0.0
    %1230 = vmatprep.subr.mxu0 0.0
    %1231 = vmatpush1.msra.mxu0 0.0
    %1232 = vmatprep.subr.mxu0 0.0
    %1233 = vmatpush1.msra.mxu0 0.0
    %1234 = vmatprep.subr.mxu0 0.0
    %1235 = vmatpush1.msra.mxu0 0.0
    %1236 = vmatprep.subr.mxu0 0.0
    %1237 = vmatpush1.msra.mxu0 0.0
    %1238 = vmatprep.subr.mxu0 0.0
    %1239 = vmatpush1.msra.mxu0 0.0
    %1240 = vmatprep.subr.mxu0 0.0
    %1241 = vmatpush1.msra.mxu0 0.0
    %1242 = vmatprep.subr.mxu0 0.0
    %1243 = vmatpush1.msra.mxu0 0.0
    %1244 = vmatprep.mubr.f32.mxu0 0.0
    %v1245 = vand.u32 %v1000, 4294901760
    %v1246 = vsub.f32 %v1000, %v1245
    %1247 = vmatmul.mubr.f32.gmra.mrb[0].mxu0 %v1246
    %v1248 = vpop.f32.mrb[0].mxu0
    %v1249 = vadd.f32 %v1169, %v1248
    %v1250 = vpop.f32.mrb[0].mxu0
    %1251 = vdwg.mxu0
    %1252 = vmatprep.subr.mxu0 0.0
    %v1253 = vand.u32 %v22, 4294901760
    %1254 = vmatpush1.msra.mxu0 %v1253
    %1255 = vmatprep.subr.mxu0 0.0
    %v1256 = vand.u32 %v23, 4294901760
    %1257 = vmatpush1.msra.mxu0 %v1256
    %1258 = vmatprep.subr.mxu0 0.0
    %v1259 = vand.u32 %v24, 4294901760
    %1260 = vmatpush1.msra.mxu0 %v1259
    %1261 = vmatprep.subr.mxu0 0.0
    %v1262 = vand.u32 %v25, 4294901760
    %1263 = vmatpush1.msra.mxu0 %v1262
    %1264 = vmatprep.subr.mxu0 0.0
    %1265 = vmatpush1.msra.mxu0 0.0
    %1266 = vmatprep.subr.mxu0 0.0
    %1267 = vmatpush1.msra.mxu0 0.0
    %1268 = vmatprep.subr.mxu0 0.0
    %1269 = vmatpush1.msra.mxu0 0.0
    %1270 = vmatprep.subr.mxu0 0.0
    %1271 = vmatpush1.msra.mxu0 0.0
    %1272 = vmatprep.subr.mxu0 0.0
    %1273 = vmatpush1.msra.mxu0 0.0
    %1274 = vmatprep.subr.mxu0 0.0
    %1275 = vmatpush1.msra.mxu0 0.0
    %1276 = vmatprep.subr.mxu0 0.0
    %1277 = vmatpush1.msra.mxu0 0.0
    %1278 = vmatprep.subr.mxu0 0.0
    %1279 = vmatpush1.msra.mxu0 0.0
    %1280 = vmatprep.subr.mxu0 0.0
    %1281 = vmatpush1.msra.mxu0 0.0
    %1282 = vmatprep.subr.mxu0 0.0
    %1283 = vmatpush1.msra.mxu0 0.0
    %1284 = vmatprep.subr.mxu0 0.0
    %1285 = vmatpush1.msra.mxu0 0.0
    %1286 = vmatprep.subr.mxu0 0.0
    %1287 = vmatpush1.msra.mxu0 0.0
    %1288 = vmatprep.subr.mxu0 0.0
    %1289 = vmatpush1.msra.mxu0 0.0
    %1290 = vmatprep.subr.mxu0 0.0
    %1291 = vmatpush1.msra.mxu0 0.0
    %1292 = vmatprep.subr.mxu0 0.0
    %1293 = vmatpush1.msra.mxu0 0.0
    %1294 = vmatprep.subr.mxu0 0.0
    %1295 = vmatpush1.msra.mxu0 0.0
    %1296 = vmatprep.subr.mxu0 0.0
    %1297 = vmatpush1.msra.mxu0 0.0
    %1298 = vmatprep.subr.mxu0 0.0
    %1299 = vmatpush1.msra.mxu0 0.0
    %1300 = vmatprep.subr.mxu0 0.0
    %1301 = vmatpush1.msra.mxu0 0.0
    %1302 = vmatprep.subr.mxu0 0.0
    %1303 = vmatpush1.msra.mxu0 0.0
    %1304 = vmatprep.subr.mxu0 0.0
    %1305 = vmatpush1.msra.mxu0 0.0
    %1306 = vmatprep.subr.mxu0 0.0
    %1307 = vmatpush1.msra.mxu0 0.0
    %1308 = vmatprep.subr.mxu0 0.0
    %1309 = vmatpush1.msra.mxu0 0.0
    %1310 = vmatprep.subr.mxu0 0.0
    %1311 = vmatpush1.msra.mxu0 0.0
    %1312 = vmatprep.subr.mxu0 0.0
    %1313 = vmatpush1.msra.mxu0 0.0
    %1314 = vmatprep.subr.mxu0 0.0
    %1315 = vmatpush1.msra.mxu0 0.0
    %1316 = vmatprep.subr.mxu0 0.0
    %1317 = vmatpush1.msra.mxu0 0.0
    %1318 = vmatprep.subr.mxu0 0.0
    %1319 = vmatpush1.msra.mxu0 0.0
    %1320 = vmatprep.mubr.f32.mxu0 0.0
    %v1321 = vand.u32 %v1000, 4294901760
    %v1322 = vsub.f32 %v1000, %v1321
    %v1323 = vand.u32 %v1322, 4294901760
    %1324 = vmatmul.mubr.f32.gmra.mrb[0].mxu0 %v1323
    %v1325 = vpop.f32.mrb[0].mxu0
    %v1326 = vadd.f32 %v1249, %v1325
    %v1327 = vpop.f32.mrb[0].mxu0
    %1328 = vdwg.mxu0
    %1329 = vmatprep.subr.mxu0 0.0
    %v1330 = vand.u32 %v22, 4294901760
    %v1331 = vsub.f32 %v22, %v1330
    %v1332 = vand.u32 %v1331, 4294901760
    %1333 = vmatpush1.msra.mxu0 %v1332
    %1334 = vmatprep.subr.mxu0 0.0
    %v1335 = vand.u32 %v23, 4294901760
    %v1336 = vsub.f32 %v23, %v1335
    %v1337 = vand.u32 %v1336, 4294901760
    %1338 = vmatpush1.msra.mxu0 %v1337
    %1339 = vmatprep.subr.mxu0 0.0
    %v1340 = vand.u32 %v24, 4294901760
    %v1341 = vsub.f32 %v24, %v1340
    %v1342 = vand.u32 %v1341, 4294901760
    %1343 = vmatpush1.msra.mxu0 %v1342
    %1344 = vmatprep.subr.mxu0 0.0
    %v1345 = vand.u32 %v25, 4294901760
    %v1346 = vsub.f32 %v25, %v1345
    %v1347 = vand.u32 %v1346, 4294901760
    %1348 = vmatpush1.msra.mxu0 %v1347
    %1349 = vmatprep.subr.mxu0 0.0
    %1350 = vmatpush1.msra.mxu0 0.0
    %1351 = vmatprep.subr.mxu0 0.0
    %1352 = vmatpush1.msra.mxu0 0.0
    %1353 = vmatprep.subr.mxu0 0.0
    %1354 = vmatpush1.msra.mxu0 0.0
    %1355 = vmatprep.subr.mxu0 0.0
    %1356 = vmatpush1.msra.mxu0 0.0
    %1357 = vmatprep.subr.mxu0 0.0
    %1358 = vmatpush1.msra.mxu0 0.0
    %1359 = vmatprep.subr.mxu0 0.0
    %1360 = vmatpush1.msra.mxu0 0.0
    %1361 = vmatprep.subr.mxu0 0.0
    %1362 = vmatpush1.msra.mxu0 0.0
    %1363 = vmatprep.subr.mxu0 0.0
    %1364 = vmatpush1.msra.mxu0 0.0
    %1365 = vmatprep.subr.mxu0 0.0
    %1366 = vmatpush1.msra.mxu0 0.0
    %1367 = vmatprep.subr.mxu0 0.0
    %1368 = vmatpush1.msra.mxu0 0.0
    %1369 = vmatprep.subr.mxu0 0.0
    %1370 = vmatpush1.msra.mxu0 0.0
    %1371 = vmatprep.subr.mxu0 0.0
    %1372 = vmatpush1.msra.mxu0 0.0
    %1373 = vmatprep.subr.mxu0 0.0
    %1374 = vmatpush1.msra.mxu0 0.0
    %1375 = vmatprep.subr.mxu0 0.0
    %1376 = vmatpush1.msra.mxu0 0.0
    %1377 = vmatprep.subr.mxu0 0.0
    %1378 = vmatpush1.msra.mxu0 0.0
    %1379 = vmatprep.subr.mxu0 0.0
    %1380 = vmatpush1.msra.mxu0 0.0
    %1381 = vmatprep.subr.mxu0 0.0
    %1382 = vmatpush1.msra.mxu0 0.0
    %1383 = vmatprep.subr.mxu0 0.0
    %1384 = vmatpush1.msra.mxu0 0.0
    %1385 = vmatprep.subr.mxu0 0.0
    %1386 = vmatpush1.msra.mxu0 0.0
    %1387 = vmatprep.subr.mxu0 0.0
    %1388 = vmatpush1.msra.mxu0 0.0
    %1389 = vmatprep.subr.mxu0 0.0
    %1390 = vmatpush1.msra.mxu0 0.0
    %1391 = vmatprep.subr.mxu0 0.0
    %1392 = vmatpush1.msra.mxu0 0.0
    %1393 = vmatprep.subr.mxu0 0.0
    %1394 = vmatpush1.msra.mxu0 0.0
    %1395 = vmatprep.subr.mxu0 0.0
    %1396 = vmatpush1.msra.mxu0 0.0
    %1397 = vmatprep.subr.mxu0 0.0
    %1398 = vmatpush1.msra.mxu0 0.0
    %1399 = vmatprep.subr.mxu0 0.0
    %1400 = vmatpush1.msra.mxu0 0.0
    %1401 = vmatprep.subr.mxu0 0.0
    %1402 = vmatpush1.msra.mxu0 0.0
    %1403 = vmatprep.subr.mxu0 0.0
    %1404 = vmatpush1.msra.mxu0 0.0
    %1405 = vmatprep.mubr.f32.mxu0 0.0
    %v1406 = vand.u32 %v1000, 4294901760
    %1407 = vmatmul.mubr.f32.gmra.mrb[0].mxu0 %v1406
    %v1408 = vpop.f32.mrb[0].mxu0
    %v1409 = vadd.f32 %v1326, %v1408
    %v1410 = vpop.f32.mrb[0].mxu0
    %1411 = vdwg.mxu0
    %1412 = vmatprep.subr.mxu0 0.0
    %v1413 = vand.u32 %v22, 4294901760
    %1414 = vmatpush1.msra.mxu0 %v1413
    %1415 = vmatprep.subr.mxu0 0.0
    %v1416 = vand.u32 %v23, 4294901760
    %1417 = vmatpush1.msra.mxu0 %v1416
    %1418 = vmatprep.subr.mxu0 0.0
    %v1419 = vand.u32 %v24, 4294901760
    %1420 = vmatpush1.msra.mxu0 %v1419
    %1421 = vmatprep.subr.mxu0 0.0
    %v1422 = vand.u32 %v25, 4294901760
    %1423 = vmatpush1.msra.mxu0 %v1422
    %1424 = vmatprep.subr.mxu0 0.0
    %1425 = vmatpush1.msra.mxu0 0.0
    %1426 = vmatprep.subr.mxu0 0.0
    %1427 = vmatpush1.msra.mxu0 0.0
    %1428 = vmatprep.subr.mxu0 0.0
    %1429 = vmatpush1.msra.mxu0 0.0
    %1430 = vmatprep.subr.mxu0 0.0
    %1431 = vmatpush1.msra.mxu0 0.0
    %1432 = vmatprep.subr.mxu0 0.0
    %1433 = vmatpush1.msra.mxu0 0.0
    %1434 = vmatprep.subr.mxu0 0.0
    %1435 = vmatpush1.msra.mxu0 0.0
    %1436 = vmatprep.subr.mxu0 0.0
    %1437 = vmatpush1.msra.mxu0 0.0
    %1438 = vmatprep.subr.mxu0 0.0
    %1439 = vmatpush1.msra.mxu0 0.0
    %1440 = vmatprep.subr.mxu0 0.0
    %1441 = vmatpush1.msra.mxu0 0.0
    %1442 = vmatprep.subr.mxu0 0.0
    %1443 = vmatpush1.msra.mxu0 0.0
    %1444 = vmatprep.subr.mxu0 0.0
    %1445 = vmatpush1.msra.mxu0 0.0
    %1446 = vmatprep.subr.mxu0 0.0
    %1447 = vmatpush1.msra.mxu0 0.0
    %1448 = vmatprep.subr.mxu0 0.0
    %1449 = vmatpush1.msra.mxu0 0.0
    %1450 = vmatprep.subr.mxu0 0.0
    %1451 = vmatpush1.msra.mxu0 0.0
    %1452 = vmatprep.subr.mxu0 0.0
    %1453 = vmatpush1.msra.mxu0 0.0
    %1454 = vmatprep.subr.mxu0 0.0
    %1455 = vmatpush1.msra.mxu0 0.0
    %1456 = vmatprep.subr.mxu0 0.0
    %1457 = vmatpush1.msra.mxu0 0.0
    %1458 = vmatprep.subr.mxu0 0.0
    %1459 = vmatpush1.msra.mxu0 0.0
    %1460 = vmatprep.subr.mxu0 0.0
    %1461 = vmatpush1.msra.mxu0 0.0
    %1462 = vmatprep.subr.mxu0 0.0
    %1463 = vmatpush1.msra.mxu0 0.0
    %1464 = vmatprep.subr.mxu0 0.0
    %1465 = vmatpush1.msra.mxu0 0.0
    %1466 = vmatprep.subr.mxu0 0.0
    %1467 = vmatpush1.msra.mxu0 0.0
    %1468 = vmatprep.subr.mxu0 0.0
    %1469 = vmatpush1.msra.mxu0 0.0
    %1470 = vmatprep.subr.mxu0 0.0
    %1471 = vmatpush1.msra.mxu0 0.0
    %1472 = vmatprep.subr.mxu0 0.0
    %1473 = vmatpush1.msra.mxu0 0.0
    %1474 = vmatprep.subr.mxu0 0.0
    %1475 = vmatpush1.msra.mxu0 0.0
    %1476 = vmatprep.subr.mxu0 0.0
    %1477 = vmatpush1.msra.mxu0 0.0
    %1478 = vmatprep.subr.mxu0 0.0
    %1479 = vmatpush1.msra.mxu0 0.0
    %1480 = vmatprep.mubr.f32.mxu0 0.0
    %v1481 = vand.u32 %v1000, 4294901760
    %1482 = vmatmul.mubr.f32.gmra.mrb[0].mxu0 %v1481
    %v1483 = vpop.f32.mrb[0].mxu0
    %v1484 = vadd.f32 %v1409, %v1483
    %v1485 = vpop.f32.mrb[0].mxu0
    %1486 = vdwg.mxu0
    %v1487 = vmax.f32 %v1484, -20.0
    %v1488 = vmin.f32 %v1487, 2.0
    %v1489 = vlaneseq
    %v1490 = vand.u32 %v1489, 127
    %vm1491 = vcmp.lt.s32.totalorder %v1490, 4
    %v1492 = vsel %vm1491, %v1484, %v1488
    %vm1493 = vcmask 58368
    %1494 = vst.msk [vmem:[#allocation2] sm:$0x3] %vm1493, %v1492
    // Predicated region
    $region14: #{tpu_custom_call.1} parent=1 // pred_check
      _
    $region15: #{tpu_custom_call.1} parent=1 // pred_check_branch
      %1496 = sbr.rel (0) target = $region17
    $region16: #{tpu_custom_call.1} parent=1 // pred_region
      %s1498 = ssub.s32 32, 32
      %1499 = vsyncadd [#allocation3], %s1498
      %s1501 = sshll.u32 [#allocation2], 4
      %s1502 = int_to_ptr.vmem [resolvable:$true] %s1501
      %1504 = dma.vmem_to_hbm [thread:$0]  %s1502, 32, %s3, [#allocation3]
    $region17: #{tpu_custom_call.1} parent=1 // pred_fallthru
      _
    // Predicated region
    $region18: #{tpu_custom_call.1} parent=1 // pred_check
      _
    $region19: #{tpu_custom_call.1} parent=1 // pred_check_branch
      %1506 = sbr.rel (0) target = $region21
    $region20: #{tpu_custom_call.1} parent=1 // pred_region
      %1507 = dma.done [#allocation3], 32
    $region21: #{tpu_custom_call.1} parent=1 // pred_fallthru
      _
    %1508 = vsyncpa [#allocation3], 1

</llo_original>
